<compile_context>
chip_gen: v6e
topology: v6e:2x2x1
jax: 0.10.0
libtpu: 0.0.40
codegen_flags: <defaults>
</compile_context>

<pallas_src>
import functools
import math

import jax
import jax.numpy as jnp
from jax import lax
from jax.experimental import pallas as pl
from jax.experimental.pallas import tpu as pltpu

# ---------------- small but MXU/lane-native config (head_dim = 128) ----------------
HIDDEN = 512
NUM_HEADS = 4
NUM_KV_HEADS = 2
HEAD_DIM = HIDDEN // NUM_HEADS                 # 128 (lane-dense)
N_REPEATS = NUM_HEADS // NUM_KV_HEADS          # 2 (grouped-query repeats)
ROPE_THETA = 10000.0
QKV_OUT = NUM_HEADS * HEAD_DIM + 2 * NUM_KV_HEADS * HEAD_DIM   # 1024

VMEM_LIMIT_BYTES = 48 * 1024 * 1024            # explicit budget; fits v7x 64 MiB/TC

# tile targets at real sizes; toy shapes collapse to full dims
Q_TILE_TARGET = 256
KV_TILE_TARGET = 256
LIN_ROW_TARGET = 512
LIN_N_TARGET = 512
LIN_K_TARGET = 512


def _pick_tile(dim, target, align):
    """Largest divisor of `dim` that is a multiple of `align` and <= target, else dim."""
    if dim <= target:
        return dim
    t = (target // align) * align
    while t >= align:
        if dim % t == 0:
            return t
        t -= align
    return dim


# ---------------- rotary helpers ----------------
def rotate_half(x):
    half = x.shape[-1] // 2
    return jnp.concatenate([-x[..., half:], x[..., :half]], axis=-1)


def rotary_tables(seq_len, head_dim, base):
    """Returns (cos, sin_signed) in f32; sin_signed has the rotate_half sign folded in
    so that inside the kernel:  x*cos + pltpu.roll(x, d//2)*sin_signed == x*cos + rotate_half(x)*sin."""
    inv_freq = 1.0 / (base ** (jnp.arange(0, head_dim, 2, dtype=jnp.float32) / head_dim))
    t = jnp.arange(seq_len, dtype=jnp.float32)
    freqs = jnp.einsum("i,j->ij", t, inv_freq)
    emb = jnp.concatenate([freqs, freqs], axis=-1)           # (S, d)
    cos = jnp.cos(emb)
    sin = jnp.sin(emb)
    sign = jnp.concatenate([-jnp.ones(head_dim // 2, jnp.float32),
                            jnp.ones(head_dim // 2, jnp.float32)])
    return cos, sin * sign[None, :]


# ---------------- Pallas: tiled linear with layout folding ----------------
def _linear_kernel(x_ref, w_ref, b_ref, o_ref, acc_ref, *,
                   n_batch, x_batch_major, out_batch_major, mxu_dtype):
    kk = pl.program_id(2)

    @pl.when(kk == 0)
    def _():
        acc_ref[...] = jnp.zeros_like(acc_ref)

    w = w_ref[...]
    if mxu_dtype is not None:
        w = w.astype(mxu_dtype)
    # static per-batch loop folds the (S,B) <-> (B,S) layout change into the kernel
    for b in range(n_batch):
        xb = x_ref[b] if x_batch_major else x_ref[:, b, :]
        if mxu_dtype is not None:
            xb = xb.astype(mxu_dtype)
        acc_ref[b] = acc_ref[b] + jnp.dot(xb, w, preferred_element_type=jnp.float32)

    @pl.when(kk == pl.num_programs(2) - 1)
    def _():
        bias = b_ref[...].astype(jnp.float32)
        for b in range(n_batch):
            yb = (acc_ref[b] + bias).astype(o_ref.dtype)
            if out_batch_major:
                o_ref[b] = yb
            else:
                o_ref[:, b, :] = yb


def pallas_linear(x, w, b, *, x_batch_major, out_batch_major, mxu_dtype=None):
    """Matmul + bias over the last dim with (S,B)<->(B,S) layout folding.
    x: (B,S,K) if x_batch_major else (S,B,K); out: (B,S,N) if out_batch_major else (S,B,N)."""
    if x_batch_major:
        B, S, K = x.shape
    else:
        S, B, K = x.shape
    Kw, N = w.shape
    assert Kw == K

    ts = _pick_tile(S, LIN_ROW_TARGET, 8)
    tn = _pick_tile(N, LIN_N_TARGET, 128)
    tk = _pick_tile(K, LIN_K_TARGET, 128)
    grid = (S // ts, N // tn, K // tk)

    if mxu_dtype is not None:
        w = w.astype(mxu_dtype)                # halve weight DMA bytes (bf16 MXU)

    if x_batch_major:
        x_spec = pl.BlockSpec((B, ts, tk), lambda si, ni, kk: (0, si, kk))
    else:
        x_spec = pl.BlockSpec((ts, B, tk), lambda si, ni, kk: (si, 0, kk))
    if out_batch_major:
        out_shape = jax.ShapeDtypeStruct((B, S, N), x.dtype)
        o_spec = pl.BlockSpec((B, ts, tn), lambda si, ni, kk: (0, si, ni))
    else:
        out_shape = jax.ShapeDtypeStruct((S, B, N), x.dtype)
        o_spec = pl.BlockSpec((ts, B, tn), lambda si, ni, kk: (si, 0, ni))

    kernel = functools.partial(_linear_kernel, n_batch=B, x_batch_major=x_batch_major,
                               out_batch_major=out_batch_major, mxu_dtype=mxu_dtype)
    itemsize = jnp.dtype(x.dtype).itemsize
    cost = pl.CostEstimate(
        flops=int(2 * B * S * K * N), transcendentals=0,
        bytes_accessed=int((B * S * K + K * N + N + B * S * N) * itemsize))
    return pl.pallas_call(
        kernel,
        out_shape=out_shape,
        grid=grid,
        in_specs=[x_spec,
                  pl.BlockSpec((tk, tn), lambda si, ni, kk: (kk, ni)),
                  pl.BlockSpec((1, tn), lambda si, ni, kk: (0, ni))],
        out_specs=o_spec,
        scratch_shapes=[pltpu.VMEM((B, ts, tn), jnp.float32)],
        compiler_params=pltpu.CompilerParams(
            dimension_semantics=("parallel", "parallel", "arbitrary"),
            vmem_limit_bytes=VMEM_LIMIT_BYTES),
        cost_estimate=cost,
    )(x, w, b.reshape(1, N))


# ---------------- Pallas: flash GQA attention with in-kernel rotary ----------------
def _flash_gqa_kernel(q_ref, kv_ref, bias_ref, cos_q_ref, sinq_ref, cos_k_ref, sink_ref,
                      o_ref, m_sc, l_sc, acc_sc, *, n_rep, d, tq, tk, scale, mxu_dtype):
    qi = pl.program_id(2)
    ki = pl.program_id(3)

    @pl.when(ki == 0)
    def _():
        m_sc[...] = jnp.full_like(m_sc, -jnp.inf)
        l_sc[...] = jnp.zeros_like(l_sc)
        acc_sc[...] = jnp.zeros_like(acc_sc)

    # skip kv tiles strictly above the causal diagonal (whole tile masked)
    @pl.when(ki * tk <= qi * tq + (tq - 1))
    def _():
        half = d // 2
        mdt = mxu_dtype if mxu_dtype is not None else jnp.float32

        # K/V of this kv head + kv tile: kv_ref is (tk, 2*d) = [K | V]
        kv = kv_ref[...].astype(jnp.float32)
        k = kv[:, :d]
        v = kv[:, d:]
        cos_k = cos_k_ref[...]
        sin_k = sink_ref[...]
        k = k * cos_k + pltpu.roll(k, shift=half, axis=1) * sin_k   # XLU rotate_half

        # pack the n_rep query heads sharing this kv head into one matmul
        cos_q = cos_q_ref[...]
        sin_q = sinq_ref[...]
        q_parts = []
        for r in range(n_rep):
            qr = q_ref[:, r * d:(r + 1) * d].astype(jnp.float32)
            qr = qr * cos_q + pltpu.roll(qr, shift=half, axis=1) * sin_q
            q_parts.append(qr * scale)                 # pre-scale q: O(S*d) not O(S^2)
        q2 = q_parts[0] if n_rep == 1 else jnp.concatenate(q_parts, axis=0)  # (n_rep*tq, d)

        s = lax.dot_general(q2.astype(mdt), k.astype(mdt),
                            (((1,), (1,)), ((), ())),
                            preferred_element_type=jnp.float32)     # (n_rep*tq, tk)

        # additive causal + key-padding bias (packed row r*tq+i -> query position qi*tq+i)
        sq = n_rep * tq
        row = lax.broadcasted_iota(jnp.int32, (sq, tk), 0)
        qpos = qi * tq + lax.rem(row, tq)
        kpos = ki * tk + lax.broadcasted_iota(jnp.int32, (sq, tk), 1)
        causal = jnp.where(kpos <= qpos, jnp.float32(0.0), jnp.float32(-1e30))
        s = s + causal + bias_ref[...]                 # bias_ref: (1, tk) padding bias

        # online softmax (flash) update
        m_prev = m_sc[...]
        m_new = jnp.maximum(m_prev, jnp.max(s, axis=-1, keepdims=True))
        alpha = jnp.exp(m_prev - m_new)
        p = jnp.exp(s - m_new)
        l_sc[...] = alpha * l_sc[...] + jnp.sum(p, axis=-1, keepdims=True)
        acc_sc[...] = alpha * acc_sc[...] + jnp.dot(p.astype(mdt), v.astype(mdt),
                                                    preferred_element_type=jnp.float32)
        m_sc[...] = m_new

    @pl.when(ki == pl.num_programs(3) - 1)
    def _():
        o = acc_sc[...] * pl.reciprocal(l_sc[...], approx=mxu_dtype is not None)
        for r in range(n_rep):                         # per-head lane-dense store, no concat
            o_ref[:, r * d:(r + 1) * d] = o[r * tq:(r + 1) * tq, :].astype(o_ref.dtype)


def pallas_gqa_attention(fused_qkv, sequence_mask, cos, sin_signed, *, mxu_dtype=None):
    """fused_qkv: (B, S, QKV_OUT), sequence_mask: (B, S) -> (B, S, hidden)."""
    B, S, qkv_width = fused_qkv.shape
    d = HEAD_DIM
    n_rep = N_REPEATS
    n_kv = NUM_KV_HEADS
    hidden = NUM_HEADS * d
    chunk = (n_rep + 2) * d
    assert qkv_width == n_kv * chunk
    # tight per-head Q/KV column blocking of the fused slab needs block-aligned offsets
    assert chunk % (n_rep * d) == 0 and n_rep % 2 == 0, \
        "per-head Q/KV blocking assumes n_repeats == 2; use chunk-wide blocks otherwise"
    q_cols = chunk // (n_rep * d)

    tq = _pick_tile(S, Q_TILE_TARGET, 8)
    tk = _pick_tile(S, KV_TILE_TARGET, 8)
    scale = 1.0 / math.sqrt(d)

    # key-padding additive bias, built once per batch outside the kernel
    kv_bias = jnp.where(sequence_mask > 0, 0.0, -1e30).astype(jnp.float32)[:, None, :]  # (B,1,S)

    kernel = functools.partial(_flash_gqa_kernel, n_rep=n_rep, d=d, tq=tq, tk=tk,
                               scale=scale, mxu_dtype=mxu_dtype)
    cost = pl.CostEstimate(
        flops=int(4 * B * NUM_HEADS * S * S * d),
        transcendentals=int(B * NUM_HEADS * S * S),
        bytes_accessed=int(4 * (2 * fused_qkv.size + kv_bias.size + 2 * cos.size
                                + B * S * hidden)))
    return pl.pallas_call(
        kernel,
        out_shape=jax.ShapeDtypeStruct((B, S, hidden), fused_qkv.dtype),
        grid=(B, n_kv, S // tq, S // tk),
        in_specs=[
            # this head's query repeats, q-tile rows
            pl.BlockSpec((None, tq, n_rep * d),
                         lambda b, g, qi, ki: (b, qi, g * q_cols)),
            # this head's [K | V], kv-tile rows
            pl.BlockSpec((None, tk, 2 * d),
                         lambda b, g, qi, ki: (b, ki, (g * chunk + n_rep * d) // (2 * d))),
            # key-padding bias for the kv tile
            pl.BlockSpec((None, 1, tk), lambda b, g, qi, ki: (b, 0, ki)),
            # rotary tables for q-tile and kv-tile rows (f32)
            pl.BlockSpec((tq, d), lambda b, g, qi, ki: (qi, 0)),
            pl.BlockSpec((tq, d), lambda b, g, qi, ki: (qi, 0)),
            pl.BlockSpec((tk, d), lambda b, g, qi, ki: (ki, 0)),
            pl.BlockSpec((tk, d), lambda b, g, qi, ki: (ki, 0)),
        ],
        out_specs=pl.BlockSpec((None, tq, n_rep * d), lambda b, g, qi, ki: (b, qi, g)),
        scratch_shapes=[pltpu.VMEM((n_rep * tq, 1), jnp.float32),   # m
                        pltpu.VMEM((n_rep * tq, 1), jnp.float32),   # l
                        pltpu.VMEM((n_rep * tq, d), jnp.float32)],  # acc
        compiler_params=pltpu.CompilerParams(
            dimension_semantics=("parallel", "parallel", "parallel", "arbitrary"),
            vmem_limit_bytes=VMEM_LIMIT_BYTES),
        cost_estimate=cost,
    )(fused_qkv, fused_qkv, kv_bias, cos, sin_signed, cos, sin_signed)


# ---------------- full forward (CausalSelfGQA.forward, no-store path) ----------------
def causal_self_gqa_forward(hidden_states, sequence_mask, params, *, mxu_dtype=None):
    S, _, _ = hidden_states.shape
    # QKV projection: reads (S,B,H), writes (B,S,QKV_OUT); layout change folded in-kernel
    fused_qkv = pallas_linear(hidden_states, params["w_qkv"], params["b_qkv"],
                              x_batch_major=False, out_batch_major=True,
                              mxu_dtype=mxu_dtype)
    cos, sin_signed = rotary_tables(S, HEAD_DIM, ROPE_THETA)   # f32 tables
    attn = pallas_gqa_attention(fused_qkv, sequence_mask, cos, sin_signed,
                                mxu_dtype=mxu_dtype)           # (B,S,hidden)
    # dense projection: reads (B,S,H), writes (S,B,H) directly; layout folded in-kernel
    out = pallas_linear(attn, params["w_dense"], params["b_dense"],
                        x_batch_major=True, out_batch_major=False,
                        mxu_dtype=mxu_dtype)
    return {"hidden_states": out, "sequence_mask": sequence_mask}


# ---------------- pure-JAX reference for verification ----------------
def reference_forward(hidden_states, sequence_mask, params):
    S, B, H = hidden_states.shape
    d = HEAD_DIM
    fused_qkv = hidden_states.reshape(S * B, H) @ params["w_qkv"] + params["b_qkv"]
    qkv = fused_qkv.reshape(S, B, NUM_KV_HEADS, N_REPEATS + 2, d)
    query = jnp.transpose(qkv[:, :, :, :N_REPEATS, :], (1, 0, 2, 3, 4)).reshape(B, S, NUM_HEADS, d)
    key = jnp.transpose(qkv[:, :, :, N_REPEATS, :], (1, 0, 2, 3))
    value = jnp.transpose(qkv[:, :, :, N_REPEATS + 1, :], (1, 0, 2, 3))
    inv_freq = 1.0 / (ROPE_THETA ** (jnp.arange(0, d, 2, dtype=jnp.float32) / d))
    t = jnp.arange(S, dtype=jnp.float32)
    emb = jnp.concatenate([jnp.einsum("i,j->ij", t, inv_freq)] * 2, axis=-1)
    cos, sin = jnp.cos(emb), jnp.sin(emb)
    cos4, sin4 = cos[None, :, None, :], sin[None, :, None, :]
    query = query * cos4 + rotate_half(query) * sin4
    key = key * cos4 + rotate_half(key) * sin4
    key = jnp.repeat(key, N_REPEATS, axis=2)
    value = jnp.repeat(value, N_REPEATS, axis=2)
    qh = jnp.transpose(query, (0, 2, 1, 3))
    kh = jnp.transpose(key, (0, 2, 1, 3))
    vh = jnp.transpose(value, (0, 2, 1, 3))
    s = jnp.einsum("bhqd,bhkd->bhqk", qh, kh) / math.sqrt(d)
    causal = jnp.tril(jnp.ones((S, S), bool))
    kvm = sequence_mask[:, None, None, :] > 0
    s = jnp.where(causal[None, None] & kvm, s, -1e30)
    p = jax.nn.softmax(s, axis=-1)
    o = jnp.einsum("bhqk,bhkd->bhqd", p, vh)
    o = jnp.transpose(o, (0, 2, 1, 3)).reshape(B, S, H)
    o = jnp.transpose(o, (1, 0, 2)).reshape(S * B, H)
    out = (o @ params["w_dense"] + params["b_dense"]).reshape(S, B, H)
    return out


if __name__ == "__main__":
    key = jax.random.PRNGKey(0)
    k1, k2, k3, k4, k5 = jax.random.split(key, 5)

    S, B = 8, 2
    hidden_states = jax.random.normal(k1, (S, B, HIDDEN), jnp.float32)
    sequence_mask = jnp.ones((B, S), jnp.int32)

    params = {
        "w_qkv": 0.02 * jax.random.normal(k2, (HIDDEN, QKV_OUT), jnp.float32),
        "b_qkv": 0.02 * jax.random.normal(k3, (QKV_OUT,), jnp.float32),
        "w_dense": 0.02 * jax.random.normal(k4, (HIDDEN, HIDDEN), jnp.float32),
        "b_dense": 0.02 * jax.random.normal(k5, (HIDDEN,), jnp.float32),
    }

    ref = reference_forward(hidden_states, sequence_mask, params)

    # f32-MXU path: tight parity with the f32 reference
    out = causal_self_gqa_forward(hidden_states, sequence_mask, params)
    jax.block_until_ready(out["hidden_states"])
    assert out["hidden_states"].shape == (S, B, HIDDEN)
    assert jnp.allclose(out["hidden_states"], ref, atol=2e-3, rtol=2e-3), "mismatch (f32, dense mask)"

    # left-padded mask: compare only valid token rows (masked query rows are don't-care)
    padded_mask = jnp.array([[1] * S, [0, 0] + [1] * (S - 2)], jnp.int32)
    out_p = causal_self_gqa_forward(hidden_states, padded_mask, params)
    jax.block_until_ready(out_p["hidden_states"])
    ref_p = reference_forward(hidden_states, padded_mask, params)
    valid = padded_mask.T[:, :, None] > 0               # (S, B, 1)
    diff = jnp.where(valid, out_p["hidden_states"] - ref_p, 0.0)
    assert jnp.max(jnp.abs(diff)) < 2e-3, "mismatch (f32, padded mask)"

    # bf16-MXU path (v6e/v7x): MXU operands in bf16, f32 accumulation and f32 softmax
    out_bf16 = causal_self_gqa_forward(hidden_states, sequence_mask, params,
                                       mxu_dtype=jnp.bfloat16)
    jax.block_until_ready(out_bf16["hidden_states"])
    assert jnp.max(jnp.abs(out_bf16["hidden_states"] - ref)) < 5e-2, "mismatch (bf16 MXU)"

    print("KERNEL_OK")
</pallas_src>

<mosaic_0001>
module attributes {stable_mosaic.version = 11 : i64} {
  func.func @_linear_kernel(%arg0: i32, %arg1: i32, %arg2: i32, %arg3: memref<8x2x512xf32, #tpu.memory_space<vmem>>, %arg4: memref<512x512xf32, #tpu.memory_space<vmem>>, %arg5: memref<1x512xf32, #tpu.memory_space<vmem>>, %arg6: memref<2x8x512xf32, #tpu.memory_space<vmem>>, %arg7: memref<2x8x512xf32, #tpu.memory_space<vmem>>) attributes {dimension_semantics = [#tpu.dimension_semantics<parallel>, #tpu.dimension_semantics<parallel>, #tpu.dimension_semantics<arbitrary>], iteration_bounds = array<i64: 1, 2, 1>, scalar_prefetch = 0 : i64, scratch_operands = 1 : i64, tpu.core_type = #tpu.core_type<tc>, window_params = [{transform_indices = @transform_0, window_bounds = array<i64: 8, 2, 512>}, {transform_indices = @transform_1, window_bounds = array<i64: 512, 512>}, {transform_indices = @transform_2, window_bounds = array<i64: 1, 512>}, {transform_indices = @transform_3, window_bounds = array<i64: 2, 8, 512>}]} {
    %c0_i32 = arith.constant 0 : i32
    %0 = arith.cmpi eq, %arg2, %c0_i32 : i32
    %1 = arith.extui %0 : i1 to i32
    %c0_i32_0 = arith.constant 0 : i32
    %2 = arith.cmpi ne, %1, %c0_i32_0 : i32
    scf.if %2 {
      %cst_22 = arith.constant 0.000000e+00 : f32
      %25 = vector.broadcast %cst_22 : f32 to vector<2x8x512xf32>
      %c0_23 = arith.constant 0 : index
      %c0_24 = arith.constant 0 : index
      %c0_25 = arith.constant 0 : index
      %26 = vector.load %arg7[%c0_23, %c0_24, %c0_25] : memref<2x8x512xf32, #tpu.memory_space<vmem>>, vector<2x8x512xf32>
      tpu.vector_store %arg7[%c0_23, %c0_24, %c0_25], %25 {strides = array<i32>} : memref<2x8x512xf32, #tpu.memory_space<vmem>>, vector<2x8x512xf32>,
    } else {
    }
    %c0 = arith.constant 0 : index
    %c0_1 = arith.constant 0 : index
    %3 = vector.load %arg4[%c0, %c0_1] : memref<512x512xf32, #tpu.memory_space<vmem>>, vector<512x512xf32>
    %c0_2 = arith.constant 0 : index
    %c0_3 = arith.constant 0 : index
    %c0_4 = arith.constant 0 : index
    %4 = vector.load %arg3[%c0_2, %c0_3, %c0_4] : memref<8x2x512xf32, #tpu.memory_space<vmem>>, vector<8x1x512xf32>
    %5 = vector.shape_cast %4 : vector<8x1x512xf32> to vector<8x512xf32>
    %c0_5 = arith.constant 0 : index
    %c0_6 = arith.constant 0 : index
    %c0_7 = arith.constant 0 : index
    %6 = vector.load %arg7[%c0_5, %c0_6, %c0_7] : memref<2x8x512xf32, #tpu.memory_space<vmem>>, vector<1x8x512xf32>
    %7 = vector.shape_cast %6 : vector<1x8x512xf32> to vector<8x512xf32>
    %cst = arith.constant dense<0.000000e+00> : vector<8x512xf32>
    %8 = tpu.matmul %5, %3, %cst {dimension_numbers = #tpu.dot_dimension_numbers<[1], [0], [0], [1], [0, 0, 1, 1], [], []>} : vector<8x512xf32>, vector<512x512xf32>, vector<8x512xf32> -> vector<8x512xf32>
    %9 = arith.addf %7, %8 : vector<8x512xf32>
    %c0_8 = arith.constant 0 : index
    %c0_9 = arith.constant 0 : index
    %c0_10 = arith.constant 0 : index
    %10 = vector.load %arg7[%c0_8, %c0_9, %c0_10] : memref<2x8x512xf32, #tpu.memory_space<vmem>>, vector<1x8x512xf32>
    %11 = vector.shape_cast %10 : vector<1x8x512xf32> to vector<8x512xf32>
    %12 = vector.shape_cast %9 : vector<8x512xf32> to vector<1x8x512xf32>
    tpu.vector_store %arg7[%c0_8, %c0_9, %c0_10], %12 {strides = array<i32>} : memref<2x8x512xf32, #tpu.memory_space<vmem>>, vector<1x8x512xf32>,
    %c0_11 = arith.constant 0 : index
    %c1 = arith.constant 1 : index
    %c0_12 = arith.constant 0 : index
    %13 = vector.load %arg3[%c0_11, %c1, %c0_12] : memref<8x2x512xf32, #tpu.memory_space<vmem>>, vector<8x1x512xf32>
    %14 = vector.shape_cast %13 : vector<8x1x512xf32> to vector<8x512xf32>
    %c1_13 = arith.constant 1 : index
    %c0_14 = arith.constant 0 : index
    %c0_15 = arith.constant 0 : index
    %15 = vector.load %arg7[%c1_13, %c0_14, %c0_15] : memref<2x8x512xf32, #tpu.memory_space<vmem>>, vector<1x8x512xf32>
    %16 = vector.shape_cast %15 : vector<1x8x512xf32> to vector<8x512xf32>
    %cst_16 = arith.constant dense<0.000000e+00> : vector<8x512xf32>
    %17 = tpu.matmul %14, %3, %cst_16 {dimension_numbers = #tpu.dot_dimension_numbers<[1], [0], [0], [1], [0, 0, 1, 1], [], []>} : vector<8x512xf32>, vector<512x512xf32>, vector<8x512xf32> -> vector<8x512xf32>
    %18 = arith.addf %16, %17 : vector<8x512xf32>
    %c1_17 = arith.constant 1 : index
    %c0_18 = arith.constant 0 : index
    %c0_19 = arith.constant 0 : index
    %19 = vector.load %arg7[%c1_17, %c0_18, %c0_19] : memref<2x8x512xf32, #tpu.memory_space<vmem>>, vector<1x8x512xf32>
    %20 = vector.shape_cast %19 : vector<1x8x512xf32> to vector<8x512xf32>
    %21 = vector.shape_cast %18 : vector<8x512xf32> to vector<1x8x512xf32>
    tpu.vector_store %arg7[%c1_17, %c0_18, %c0_19], %21 {strides = array<i32>} : memref<2x8x512xf32, #tpu.memory_space<vmem>>, vector<1x8x512xf32>,
    %c0_i32_20 = arith.constant 0 : i32
    %22 = arith.cmpi eq, %arg2, %c0_i32_20 : i32
    %23 = arith.extui %22 : i1 to i32
    %c0_i32_21 = arith.constant 0 : i32
    %24 = arith.cmpi ne, %23, %c0_i32_21 : i32
    scf.if %24 {
      %c0_22 = arith.constant 0 : index
      %c0_23 = arith.constant 0 : index
      %25 = vector.load %arg5[%c0_22, %c0_23] : memref<1x512xf32, #tpu.memory_space<vmem>>, vector<1x512xf32>
      %c0_24 = arith.constant 0 : index
      %c0_25 = arith.constant 0 : index
      %c0_26 = arith.constant 0 : index
      %26 = vector.load %arg7[%c0_24, %c0_25, %c0_26] : memref<2x8x512xf32, #tpu.memory_space<vmem>>, vector<1x8x512xf32>
      %27 = vector.shape_cast %26 : vector<1x8x512xf32> to vector<8x512xf32>
      %28 = vector.broadcast %25 : vector<1x512xf32> to vector<8x512xf32>
      %29 = arith.addf %27, %28 : vector<8x512xf32>
      %c0_27 = arith.constant 0 : index
      %c0_28 = arith.constant 0 : index
      %c0_29 = arith.constant 0 : index
      %30 = vector.load %arg6[%c0_27, %c0_28, %c0_29] : memref<2x8x512xf32, #tpu.memory_space<vmem>>, vector<1x8x512xf32>
      %31 = vector.shape_cast %30 : vector<1x8x512xf32> to vector<8x512xf32>
      %32 = vector.shape_cast %29 : vector<8x512xf32> to vector<1x8x512xf32>
      tpu.vector_store %arg6[%c0_27, %c0_28, %c0_29], %32 {strides = array<i32>} : memref<2x8x512xf32, #tpu.memory_space<vmem>>, vector<1x8x512xf32>,
      %c1_30 = arith.constant 1 : index
      %c0_31 = arith.constant 0 : index
      %c0_32 = arith.constant 0 : index
      %33 = vector.load %arg7[%c1_30, %c0_31, %c0_32] : memref<2x8x512xf32, #tpu.memory_space<vmem>>, vector<1x8x512xf32>
      %34 = vector.shape_cast %33 : vector<1x8x512xf32> to vector<8x512xf32>
      %35 = vector.broadcast %25 : vector<1x512xf32> to vector<8x512xf32>
      %36 = arith.addf %34, %35 : vector<8x512xf32>
      %c1_33 = arith.constant 1 : index
      %c0_34 = arith.constant 0 : index
      %c0_35 = arith.constant 0 : index
      %37 = vector.load %arg6[%c1_33, %c0_34, %c0_35] : memref<2x8x512xf32, #tpu.memory_space<vmem>>, vector<1x8x512xf32>
      %38 = vector.shape_cast %37 : vector<1x8x512xf32> to vector<8x512xf32>
      %39 = vector.shape_cast %36 : vector<8x512xf32> to vector<1x8x512xf32>
      tpu.vector_store %arg6[%c1_33, %c0_34, %c0_35], %39 {strides = array<i32>} : memref<2x8x512xf32, #tpu.memory_space<vmem>>, vector<1x8x512xf32>,
    } else {
    }
    return
  }
  func.func @transform_0(%arg0: i32, %arg1: i32, %arg2: i32) -> (i32, i32, i32) {
    %c0_i32 = arith.constant 0 : i32
    %c0_i32_0 = arith.constant 0 : i32
    return %arg0, %c0_i32, %arg2 : i32, i32, i32
  }
  func.func @transform_1(%arg0: i32, %arg1: i32, %arg2: i32) -> (i32, i32) {
    %c0_i32 = arith.constant 0 : i32
    return %arg2, %arg1 : i32, i32
  }
  func.func @transform_2(%arg0: i32, %arg1: i32, %arg2: i32) -> (i32, i32) {
    %c0_i32 = arith.constant 0 : i32
    %c0_i32_0 = arith.constant 0 : i32
    return %c0_i32, %arg1 : i32, i32
  }
  func.func @transform_3(%arg0: i32, %arg1: i32, %arg2: i32) -> (i32, i32, i32) {
    %c0_i32 = arith.constant 0 : i32
    %c0_i32_0 = arith.constant 0 : i32
    return %c0_i32, %arg0, %arg1 : i32, i32, i32
  }
}

</mosaic_0001>

<llo_original>
// kernel: tpu_custom_call.1
$region0: #{tpu_custom_call.1}
  #allocation0 [shape = 'u32[]', space=smem, size = 0x4, offset = 0x4, fixed_abs, tag = 'smem constant byte address 0x4 - core index']
  #allocation1 [shape = 'u32[144,128]{1,0:T(1,128)}', space=vmem, size = 0x12000, scoped, tag = 'internal scratch']
  #allocation2 [shape = 'f32[2,8,512]{2,1,0:T(8,128)}', space=vmem, size = 0x8000, scoped, tag = 'scratch operand']
  %s0 = inlined_call_operand.hbm [shape: f32[8,2,512], index: 0, kind: input, shape index: {}]
  %s1 = inlined_call_operand.hbm [shape: f32[512,1024], index: 1, kind: input, shape index: {}]
  %s2 = inlined_call_operand.hbm [shape: f32[1,1024], index: 2, kind: input, shape index: {}]
  %s3 = inlined_call_operand.hbm [shape: f32[2,8,1024], index: 3, kind: output, shape index: {}]
  %s4 = sld [smem:[#allocation0]]
  $region65: #{tpu_custom_call.1} parent=0
    _
  %s6 = ssub.s32 1, %s4
  %s7 = scalar_select 0, %s6, %s4
  $region1: #{tpu_custom_call.1} parent=0
    #allocation3 [shape = 'u8[32768]{0}', space=vmem, size = 0x8000, scoped, tag = 'input window, operand 0, single buffered']
    #allocation4 [shape = 's32[2]{0}', space=sflag, size = 0x8, scoped, tag = 'scoped memory for tpu_custom_call.1']
    #allocation5 [shape = 's32[2]{0}', space=sflag, size = 0x8, scoped, tag = 'scoped memory for tpu_custom_call.1']
    #allocation6 [shape = 'u8[2097152]{0}', space=vmem, size = 0x200000, scoped, tag = 'input window, operand 1']
    #allocation7 [shape = 's32[2]{0}', space=sflag, size = 0x8, scoped, tag = 'scoped memory for tpu_custom_call.1']
    #allocation8 [shape = 'u8[4096]{0}', space=vmem, size = 0x1000, scoped, tag = 'input window, operand 2']
    #allocation9 [shape = 'u8[65536]{0}', space=vmem, size = 0x10000, scoped, tag = 'output window, operand 0']
    %8 = vsyncpa [#allocation4], 0
    %9 = vsyncpa [#allocation7], 0
    %s10 = scalar_lea.sflag [#allocation7], 1
    %11 = vsyncpa %s10, 0
    %12 = vsyncpa [#allocation5], 0
    %s13 = scalar_lea.sflag [#allocation5], 1
    %14 = vsyncpa %s13, 0
    loop: start=0, step=1, limit=4
    $region2: #{tpu_custom_call.1} parent=1 // loop_pre_header
      _
    $region3: #{tpu_custom_call.1} parent=1 // loop_header
      %s16 = sphi 0, %s20
      %p17 = scmp.ge.s32.totalorder %s16, 4
      %s23 = sphi 0, %s42
      %s24 = sphi 0, %s38
      %s25 = sphi 0, %s34
      %s26 = sphi 0, %s23
      %s27 = sphi 0, %s24
      %s28 = sphi 0, %s25
      %s29 = sphi 0, %s26
      %s30 = sphi 0, %s27
      %s31 = sphi 0, %s28
      %s47 = sphi 0, %s49
      %s50 = sphi 0, %s47
      %s51 = sphi 0, %s50
      %s67 = sphi 0, %s51
      %s75 = sphi 0, %s77
      %s78 = sphi 0, %s75
      %s79 = sphi 0, %s78
      %s95 = sphi 0, %s79
      %s101 = sphi 0, %s103
      %s104 = sphi 0, %s101
      %s105 = sphi 0, %s104
      %s121 = sphi 0, %s105
      %s129 = sphi 0, %s131
      %s132 = sphi 0, %s129
      %s133 = sphi 0, %s132
      %s149 = sphi 0, %s133
    $region4: #{tpu_custom_call.1} parent=1 // loop_header_branch
      %19 = sbr.rel (%p17) target = $region8
    $region5: #{tpu_custom_call.1} parent=1 // loop_body
      %s21 = ssub.s32 %s16, 1
      %s22 = ssub.s32 %s16, 2
      %s32 = sadd.s32 1, %s25
      %p33 = scmp.ge.s32.totalorder %s32, 1
      %s34 = scalar_select %p33, 0, %s32
      %s35 = sadd.s32 1, %s24
      %s36 = scalar_select %p33, %s35, %s24
      %p37 = scmp.ge.s32.totalorder %s36, 2
      %s38 = scalar_select %p37, 0, %s36
      %s39 = sadd.s32 1, %s23
      %s40 = scalar_select %p37, %s39, %s23
      %p41 = scmp.ge.s32.totalorder %s40, 1
      %s42 = scalar_select %p41, 0, %s40
      %s43 = ssub.s32 %s23, %s42
      %s44 = ssub.s32 %s25, %s34
      %s45 = sor.u32 %s43, %s44
      %p46 = scmp.eq.s32.totalorder %s45, 0
      %s48 = sadd.s32 %s47, 1
      %s49 = scalar_select %p46, %s47, %s48
      %p52 = pneg %p46
      %p53 = scmp.eq.s32.totalorder %s16, 1
      %p54 = por %p52, %p53
      %p55 = scmp.ne.s32.totalorder %s47, %s50
      %p56 = scmp.eq.s32.totalorder %s16, 0
      %p57 = por %p55, %p56
      %p58 = scmp.ne.s32.totalorder %s47, %s50
      %p59 = scmp.eq.s32.totalorder %s21, 1
      %p60 = por %p58, %p59
      %p61 = scmp.ne.s32.totalorder %s50, %s51
      %p62 = scmp.eq.s32.totalorder %s21, 0
      %p63 = por %p61, %p62
      %p64 = scmp.ne.s32.totalorder %s50, %s51
      %p65 = scmp.eq.s32.totalorder %s22, 1
      %p66 = por %p64, %p65
      %p68 = scmp.ne.s32.totalorder %s51, %s67
      %p69 = scmp.eq.s32.totalorder %s22, 0
      %p70 = por %p68, %p69
      %s71 = ssub.s32 %s25, %s34
      %s72 = ssub.s32 %s24, %s38
      %s73 = sor.u32 %s71, %s72
      %p74 = scmp.eq.s32.totalorder %s73, 0
      %s76 = sadd.s32 %s75, 1
      %s77 = scalar_select %p74, %s75, %s76
      %p80 = pneg %p74
      %p81 = scmp.eq.s32.totalorder %s16, 1
      %p82 = por %p80, %p81
      %p83 = scmp.ne.s32.totalorder %s75, %s78
      %p84 = scmp.eq.s32.totalorder %s16, 0
      %p85 = por %p83, %p84
      %p86 = scmp.ne.s32.totalorder %s75, %s78
      %p87 = scmp.eq.s32.totalorder %s21, 1
      %p88 = por %p86, %p87
      %p89 = scmp.ne.s32.totalorder %s78, %s79
      %p90 = scmp.eq.s32.totalorder %s21, 0
      %p91 = por %p89, %p90
      %p92 = scmp.ne.s32.totalorder %s78, %s79
      %p93 = scmp.eq.s32.totalorder %s22, 1
      %p94 = por %p92, %p93
      %p96 = scmp.ne.s32.totalorder %s79, %s95
      %p97 = scmp.eq.s32.totalorder %s22, 0
      %p98 = por %p96, %p97
      %s99 = ssub.s32 %s24, %s38
      %p100 = scmp.eq.s32.totalorder %s99, 0
      %s102 = sadd.s32 %s101, 1
      %s103 = scalar_select %p100, %s101, %s102
      %p106 = pneg %p100
      %p107 = scmp.eq.s32.totalorder %s16, 1
      %p108 = por %p106, %p107
      %p109 = scmp.ne.s32.totalorder %s101, %s104
      %p110 = scmp.eq.s32.totalorder %s16, 0
      %p111 = por %p109, %p110
      %p112 = scmp.ne.s32.totalorder %s101, %s104
      %p113 = scmp.eq.s32.totalorder %s21, 1
      %p114 = por %p112, %p113
      %p115 = scmp.ne.s32.totalorder %s104, %s105
      %p116 = scmp.eq.s32.totalorder %s21, 0
      %p117 = por %p115, %p116
      %p118 = scmp.ne.s32.totalorder %s104, %s105
      %p119 = scmp.eq.s32.totalorder %s22, 1
      %p120 = por %p118, %p119
      %p122 = scmp.ne.s32.totalorder %s105, %s121
      %p123 = scmp.eq.s32.totalorder %s22, 0
      %p124 = por %p122, %p123
      %s125 = ssub.s32 %s23, %s42
      %s126 = ssub.s32 %s24, %s38
      %s127 = sor.u32 %s125, %s126
      %p128 = scmp.eq.s32.totalorder %s127, 0
      %s130 = sadd.s32 %s129, 1
      %s131 = scalar_select %p128, %s129, %s130
      %p134 = pneg %p128
      %p135 = scmp.eq.s32.totalorder %s16, 1
      %p136 = por %p134, %p135
      %p137 = scmp.ne.s32.totalorder %s129, %s132
      %p138 = scmp.eq.s32.totalorder %s16, 0
      %p139 = por %p137, %p138
      %p140 = scmp.ne.s32.totalorder %s129, %s132
      %p141 = scmp.eq.s32.totalorder %s21, 1
      %p142 = por %p140, %p141
      %p143 = scmp.ne.s32.totalorder %s132, %s133
      %p144 = scmp.eq.s32.totalorder %s21, 0
      %p145 = por %p143, %p144
      %p146 = scmp.ne.s32.totalorder %s132, %s133
      %p147 = scmp.eq.s32.totalorder %s22, 1
      %p148 = por %p146, %p147
      %p150 = scmp.ne.s32.totalorder %s133, %s149
      %p151 = scmp.eq.s32.totalorder %s22, 0
      %p152 = por %p150, %p151
      %p153 = scmp.le.s32.totalorder 1, %s16
      %p154 = scmp.lt.s32.totalorder %s16, 3
      %p155 = pnand %p153, %p154
      %p156 = pneg %p155
      // Predicated region
      $region9: #{tpu_custom_call.1} parent=5 // pred_check
        _
      $region10: #{tpu_custom_call.1} parent=5 // pred_check_branch
        %158 = sbr.rel (%p155) target = $region12
      $region11: #{tpu_custom_call.1} parent=5 // pred_region
        %s159 = ssub.s32 %s16, 1
        // Predicated region
        $region13: #{tpu_custom_call.1} parent=11 // pred_check
          %p160 = pneg %p63
        $region14: #{tpu_custom_call.1} parent=11 // pred_check_branch
          %162 = sbr.rel (%p160) target = $region16
        $region15: #{tpu_custom_call.1} parent=11 // pred_region
          %s163 = smul.u32 8, %s26
          %s164 = smul.u32 4, %s28
          %s166 = ssub.s32 1024, 1024
          %167 = vsyncadd [#allocation4], %s166
          %s168 = smul.addr %s163, 4
          %s169 = sadd.s32 %s164, %s168
          %s170 = smul.addr %s169, 32
          %s171 = scalar_lea.hbm %s0, %s170
          %s172 = sshll.u32 [#allocation3], 4
          %s173 = int_to_ptr.vmem [resolvable:$true] %s172
          %178 = dma.hbm_to_vmem [thread:$0]  %s171, 1024, %s173, [#allocation4], 128, 128, 8
        $region16: #{tpu_custom_call.1} parent=11 // pred_fallthru
          _
      $region12: #{tpu_custom_call.1} parent=5 // pred_fallthru
        _
      %p179 = scmp.lt.s32.totalorder %s16, 2
      // Predicated region
      $region17: #{tpu_custom_call.1} parent=5 // pred_check
        %p180 = pneg %p179
      $region18: #{tpu_custom_call.1} parent=5 // pred_check_branch
        %182 = sbr.rel (%p180) target = $region20
      $region19: #{tpu_custom_call.1} parent=5 // pred_region
        // Predicated region
        $region21: #{tpu_custom_call.1} parent=19 // pred_check
          %p183 = pneg %p85
        $region22: #{tpu_custom_call.1} parent=19 // pred_check_branch
          %185 = sbr.rel (%p183) target = $region24
        $region23: #{tpu_custom_call.1} parent=19 // pred_region
          %s186 = sand.u32 %s16, 1
          %s187 = scalar_lea.sflag [#allocation7], %s186
          %s188 = sand.u32 %s75, 1
          %s189 = smul.addr %s188, 2048
          %s190 = scalar_lea.vmem [#allocation6], %s189
          %s191 = smul.u32 64, %s25
          %s192 = smul.u32 4, %s24
          %s194 = ssub.s32 32768, 32768
          %195 = vsyncadd %s187, %s194
          %s196 = smul.addr %s191, 8
          %s197 = sadd.s32 %s192, %s196
          %s198 = smul.addr %s197, 128
          %s199 = scalar_lea.hbm %s1, %s198
          %s200 = sshll.u32 %s190, 4
          %s201 = int_to_ptr.vmem [resolvable:$true] %s200
          %206 = dma.hbm_to_vmem [thread:$0]  %s199, 32768, %s201, %s187, 1024, 512, 32
        $region24: #{tpu_custom_call.1} parent=19 // pred_fallthru
          _
        // Predicated region
        $region25: #{tpu_custom_call.1} parent=19 // pred_check
          %p207 = pneg %p111
        $region26: #{tpu_custom_call.1} parent=19 // pred_check_branch
          %209 = sbr.rel (%p207) target = $region28
        $region27: #{tpu_custom_call.1} parent=19 // pred_region
          %s210 = sand.u32 %s16, 1
          %s211 = scalar_lea.sflag [#allocation7], %s210
          %s212 = sand.u32 %s101, 1
          %s213 = smul.addr %s212, 4
          %s214 = scalar_lea.vmem [#allocation8], %s213
          %s215 = smul.u32 4, %s24
          %s217 = ssub.s32 64, 64
          %218 = vsyncadd %s211, %s217
          %s219 = smul.addr %s215, 16
          %s220 = scalar_lea.hbm %s2, %s219
          %s222 = sshll.u32 %s214, 4
          %s223 = int_to_ptr.vmem [resolvable:$true] %s222
          %225 = dma.hbm_to_vmem [thread:$0]  %s220, 64, %s223, %s211
        $region28: #{tpu_custom_call.1} parent=19 // pred_fallthru
          _
      $region20: #{tpu_custom_call.1} parent=5 // pred_fallthru
        _
      %p226 = scmp.le.s32.totalorder 1, %s16
      %p227 = scmp.lt.s32.totalorder %s16, 3
      %p228 = pnand %p226, %p227
      %p229 = pneg %p228
      // Predicated region
      $region29: #{tpu_custom_call.1} parent=5 // pred_check
        _
      $region30: #{tpu_custom_call.1} parent=5 // pred_check_branch
        %231 = sbr.rel (%p228) target = $region32
      $region31: #{tpu_custom_call.1} parent=5 // pred_region
        %s232 = ssub.s32 %s16, 1
        // Predicated region
        $region33: #{tpu_custom_call.1} parent=31 // pred_check
          %p233 = pneg %p63
        $region34: #{tpu_custom_call.1} parent=31 // pred_check_branch
          %235 = sbr.rel (%p233) target = $region36
        $region35: #{tpu_custom_call.1} parent=31 // pred_region
          %236 = dma.done [#allocation4], 1024
        $region36: #{tpu_custom_call.1} parent=31 // pred_fallthru
          _
        %s237 = sand.u32 %s21, 1
        %s238 = scalar_lea.sflag [#allocation7], %s237
        %s239 = sand.u32 %s78, 1
        %s240 = smul.addr %s239, 2048
        %s241 = scalar_lea.vmem [#allocation6], %s240
        // Predicated region
        $region37: #{tpu_custom_call.1} parent=31 // pred_check
          %p242 = pneg %p91
        $region38: #{tpu_custom_call.1} parent=31 // pred_check_branch
          %244 = sbr.rel (%p242) target = $region40
        $region39: #{tpu_custom_call.1} parent=31 // pred_region
          %245 = dma.done %s238, 32768
        $region40: #{tpu_custom_call.1} parent=31 // pred_fallthru
          _
        %s246 = sand.u32 %s21, 1
        %s247 = scalar_lea.sflag [#allocation7], %s246
        %s248 = sand.u32 %s104, 1
        %s249 = smul.addr %s248, 4
        %s250 = scalar_lea.vmem [#allocation8], %s249
        // Predicated region
        $region41: #{tpu_custom_call.1} parent=31 // pred_check
          %p251 = pneg %p117
        $region42: #{tpu_custom_call.1} parent=31 // pred_check_branch
          %253 = sbr.rel (%p251) target = $region44
        $region43: #{tpu_custom_call.1} parent=31 // pred_region
          %254 = dma.done %s247, 64
        $region44: #{tpu_custom_call.1} parent=31 // pred_fallthru
          _
        %p255 = pneg %p63
        %p256 = pneg %p60
        %s257 = sand.u32 %s21, 1
        %s258 = scalar_lea.sflag [#allocation7], %s257
        %s259 = sand.u32 %s78, 1
        %s260 = smul.addr %s259, 2048
        %s261 = scalar_lea.vmem [#allocation6], %s260
        %p262 = pneg %p91
        %p263 = pneg %p88
        %s264 = sand.u32 %s21, 1
        %s265 = scalar_lea.sflag [#allocation7], %s264
        %s266 = sand.u32 %s104, 1
        %s267 = smul.addr %s266, 4
        %s268 = scalar_lea.vmem [#allocation8], %s267
        %p269 = pneg %p117
        %p270 = pneg %p114
        %p271 = pneg %p145
        %p272 = pneg %p142
        %s273 = sand.u32 %s132, 1
        %s274 = scalar_lea.sflag [#allocation5], %s273
        %s275 = sand.u32 %s132, 1
        %s276 = smul.addr %s275, 64
        %s277 = scalar_lea.vmem [#allocation9], %s276
        %s278 = smul.u32 8, %s26
        %s279 = smul.u32 4, %s28
        %s280 = smul.u32 64, %s28
        %s281 = smul.u32 4, %s27
        %s282 = smul.u32 4, %s27
        %s283 = smul.u32 4, %s27
        %p284 = scmp.eq.s32.totalorder %s28, 0
        // Predicated region
        $region45: #{tpu_custom_call.1} parent=31 // pred_check
          %p285 = pneg %p284
        $region46: #{tpu_custom_call.1} parent=31 // pred_check_branch
          %287 = sbr.rel (%p285) target = $region48
        $region47: #{tpu_custom_call.1} parent=31 // pred_region
          %288 = vst [vmem:[#allocation2] sm:$0xff] 0.0
          %289 = vst [vmem:[#allocation2 + $0x8] sm:$0xff] 0.0
          %290 = vst [vmem:[#allocation2 + $0x10] sm:$0xff] 0.0
          %291 = vst [vmem:[#allocation2 + $0x18] sm:$0xff] 0.0
          %292 = vst [vmem:[#allocation2 + $0x20] sm:$0xff] 0.0
          %293 = vst [vmem:[#allocation2 + $0x28] sm:$0xff] 0.0
          %294 = vst [vmem:[#allocation2 + $0x30] sm:$0xff] 0.0
          %295 = vst [vmem:[#allocation2 + $0x38] sm:$0xff] 0.0
        $region48: #{tpu_custom_call.1} parent=31 // pred_fallthru
          _
        %v296 = vld [vmem:[%s241] sm:$0xff]
        %v297 = vld [vmem:[%s241 + $0x8] sm:$0xff]
        %v298 = vld [vmem:[%s241 + $0x10] sm:$0xff]
        %v299 = vld [vmem:[%s241 + $0x18] sm:$0xff]
        %v300 = vld [vmem:[%s241 + $0x20] sm:$0xff]
        %v301 = vld [vmem:[%s241 + $0x28] sm:$0xff]
        %v302 = vld [vmem:[%s241 + $0x30] sm:$0xff]
        %v303 = vld [vmem:[%s241 + $0x38] sm:$0xff]
        %v304 = vld [vmem:[%s241 + $0x40] sm:$0xff]
        %v305 = vld [vmem:[%s241 + $0x48] sm:$0xff]
        %v306 = vld [vmem:[%s241 + $0x50] sm:$0xff]
        %v307 = vld [vmem:[%s241 + $0x58] sm:$0xff]
        %v308 = vld [vmem:[%s241 + $0x60] sm:$0xff]
        %v309 = vld [vmem:[%s241 + $0x68] sm:$0xff]
        %v310 = vld [vmem:[%s241 + $0x70] sm:$0xff]
        %v311 = vld [vmem:[%s241 + $0x78] sm:$0xff]
        %v312 = vld [vmem:[%s241 + $0x80] sm:$0xff]
        %v313 = vld [vmem:[%s241 + $0x88] sm:$0xff]
        %v314 = vld [vmem:[%s241 + $0x90] sm:$0xff]
        %v315 = vld [vmem:[%s241 + $0x98] sm:$0xff]
        %v316 = vld [vmem:[%s241 + $0xa0] sm:$0xff]
        %v317 = vld [vmem:[%s241 + $0xa8] sm:$0xff]
        %v318 = vld [vmem:[%s241 + $0xb0] sm:$0xff]
        %v319 = vld [vmem:[%s241 + $0xb8] sm:$0xff]
        %v320 = vld [vmem:[%s241 + $0xc0] sm:$0xff]
        %v321 = vld [vmem:[%s241 + $0xc8] sm:$0xff]
        %v322 = vld [vmem:[%s241 + $0xd0] sm:$0xff]
        %v323 = vld [vmem:[%s241 + $0xd8] sm:$0xff]
        %v324 = vld [vmem:[%s241 + $0xe0] sm:$0xff]
        %v325 = vld [vmem:[%s241 + $0xe8] sm:$0xff]
        %v326 = vld [vmem:[%s241 + $0xf0] sm:$0xff]
        %v327 = vld [vmem:[%s241 + $0xf8] sm:$0xff]
        %v328 = vld [vmem:[%s241 + $0x100] sm:$0xff]
        %v329 = vld [vmem:[%s241 + $0x108] sm:$0xff]
        %v330 = vld [vmem:[%s241 + $0x110] sm:$0xff]
        %v331 = vld [vmem:[%s241 + $0x118] sm:$0xff]
        %v332 = vld [vmem:[%s241 + $0x120] sm:$0xff]
        %v333 = vld [vmem:[%s241 + $0x128] sm:$0xff]
        %v334 = vld [vmem:[%s241 + $0x130] sm:$0xff]
        %v335 = vld [vmem:[%s241 + $0x138] sm:$0xff]
        %v336 = vld [vmem:[%s241 + $0x140] sm:$0xff]
        %v337 = vld [vmem:[%s241 + $0x148] sm:$0xff]
        %v338 = vld [vmem:[%s241 + $0x150] sm:$0xff]
        %v339 = vld [vmem:[%s241 + $0x158] sm:$0xff]
        %v340 = vld [vmem:[%s241 + $0x160] sm:$0xff]
        %v341 = vld [vmem:[%s241 + $0x168] sm:$0xff]
        %v342 = vld [vmem:[%s241 + $0x170] sm:$0xff]
        %v343 = vld [vmem:[%s241 + $0x178] sm:$0xff]
        %v344 = vld [vmem:[%s241 + $0x180] sm:$0xff]
        %v345 = vld [vmem:[%s241 + $0x188] sm:$0xff]
        %v346 = vld [vmem:[%s241 + $0x190] sm:$0xff]
        %v347 = vld [vmem:[%s241 + $0x198] sm:$0xff]
        %v348 = vld [vmem:[%s241 + $0x1a0] sm:$0xff]
        %v349 = vld [vmem:[%s241 + $0x1a8] sm:$0xff]
        %v350 = vld [vmem:[%s241 + $0x1b0] sm:$0xff]
        %v351 = vld [vmem:[%s241 + $0x1b8] sm:$0xff]
        %v352 = vld [vmem:[%s241 + $0x1c0] sm:$0xff]
        %v353 = vld [vmem:[%s241 + $0x1c8] sm:$0xff]
        %v354 = vld [vmem:[%s241 + $0x1d0] sm:$0xff]
        %v355 = vld [vmem:[%s241 + $0x1d8] sm:$0xff]
        %v356 = vld [vmem:[%s241 + $0x1e0] sm:$0xff]
        %v357 = vld [vmem:[%s241 + $0x1e8] sm:$0xff]
        %v358 = vld [vmem:[%s241 + $0x1f0] sm:$0xff]
        %v359 = vld [vmem:[%s241 + $0x1f8] sm:$0xff]
        %v360 = vld [vmem:[%s241 + $0x200] sm:$0xff]
        %v361 = vld [vmem:[%s241 + $0x208] sm:$0xff]
        %v362 = vld [vmem:[%s241 + $0x210] sm:$0xff]
        %v363 = vld [vmem:[%s241 + $0x218] sm:$0xff]
        %v364 = vld [vmem:[%s241 + $0x220] sm:$0xff]
        %v365 = vld [vmem:[%s241 + $0x228] sm:$0xff]
        %v366 = vld [vmem:[%s241 + $0x230] sm:$0xff]
        %v367 = vld [vmem:[%s241 + $0x238] sm:$0xff]
        %v368 = vld [vmem:[%s241 + $0x240] sm:$0xff]
        %v369 = vld [vmem:[%s241 + $0x248] sm:$0xff]
        %v370 = vld [vmem:[%s241 + $0x250] sm:$0xff]
        %v371 = vld [vmem:[%s241 + $0x258] sm:$0xff]
        %v372 = vld [vmem:[%s241 + $0x260] sm:$0xff]
        %v373 = vld [vmem:[%s241 + $0x268] sm:$0xff]
        %v374 = vld [vmem:[%s241 + $0x270] sm:$0xff]
        %v375 = vld [vmem:[%s241 + $0x278] sm:$0xff]
        %v376 = vld [vmem:[%s241 + $0x280] sm:$0xff]
        %v377 = vld [vmem:[%s241 + $0x288] sm:$0xff]
        %v378 = vld [vmem:[%s241 + $0x290] sm:$0xff]
        %v379 = vld [vmem:[%s241 + $0x298] sm:$0xff]
        %v380 = vld [vmem:[%s241 + $0x2a0] sm:$0xff]
        %v381 = vld [vmem:[%s241 + $0x2a8] sm:$0xff]
        %v382 = vld [vmem:[%s241 + $0x2b0] sm:$0xff]
        %v383 = vld [vmem:[%s241 + $0x2b8] sm:$0xff]
        %v384 = vld [vmem:[%s241 + $0x2c0] sm:$0xff]
        %v385 = vld [vmem:[%s241 + $0x2c8] sm:$0xff]
        %v386 = vld [vmem:[%s241 + $0x2d0] sm:$0xff]
        %v387 = vld [vmem:[%s241 + $0x2d8] sm:$0xff]
        %v388 = vld [vmem:[%s241 + $0x2e0] sm:$0xff]
        %v389 = vld [vmem:[%s241 + $0x2e8] sm:$0xff]
        %v390 = vld [vmem:[%s241 + $0x2f0] sm:$0xff]
        %v391 = vld [vmem:[%s241 + $0x2f8] sm:$0xff]
        %v392 = vld [vmem:[%s241 + $0x300] sm:$0xff]
        %v393 = vld [vmem:[%s241 + $0x308] sm:$0xff]
        %v394 = vld [vmem:[%s241 + $0x310] sm:$0xff]
        %v395 = vld [vmem:[%s241 + $0x318] sm:$0xff]
        %v396 = vld [vmem:[%s241 + $0x320] sm:$0xff]
        %v397 = vld [vmem:[%s241 + $0x328] sm:$0xff]
        %v398 = vld [vmem:[%s241 + $0x330] sm:$0xff]
        %v399 = vld [vmem:[%s241 + $0x338] sm:$0xff]
        %v400 = vld [vmem:[%s241 + $0x340] sm:$0xff]
        %v401 = vld [vmem:[%s241 + $0x348] sm:$0xff]
        %v402 = vld [vmem:[%s241 + $0x350] sm:$0xff]
        %v403 = vld [vmem:[%s241 + $0x358] sm:$0xff]
        %v404 = vld [vmem:[%s241 + $0x360] sm:$0xff]
        %v405 = vld [vmem:[%s241 + $0x368] sm:$0xff]
        %v406 = vld [vmem:[%s241 + $0x370] sm:$0xff]
        %v407 = vld [vmem:[%s241 + $0x378] sm:$0xff]
        %v408 = vld [vmem:[%s241 + $0x380] sm:$0xff]
        %v409 = vld [vmem:[%s241 + $0x388] sm:$0xff]
        %v410 = vld [vmem:[%s241 + $0x390] sm:$0xff]
        %v411 = vld [vmem:[%s241 + $0x398] sm:$0xff]
        %v412 = vld [vmem:[%s241 + $0x3a0] sm:$0xff]
        %v413 = vld [vmem:[%s241 + $0x3a8] sm:$0xff]
        %v414 = vld [vmem:[%s241 + $0x3b0] sm:$0xff]
        %v415 = vld [vmem:[%s241 + $0x3b8] sm:$0xff]
        %v416 = vld [vmem:[%s241 + $0x3c0] sm:$0xff]
        %v417 = vld [vmem:[%s241 + $0x3c8] sm:$0xff]
        %v418 = vld [vmem:[%s241 + $0x3d0] sm:$0xff]
        %v419 = vld [vmem:[%s241 + $0x3d8] sm:$0xff]
        %v420 = vld [vmem:[%s241 + $0x3e0] sm:$0xff]
        %v421 = vld [vmem:[%s241 + $0x3e8] sm:$0xff]
        %v422 = vld [vmem:[%s241 + $0x3f0] sm:$0xff]
        %v423 = vld [vmem:[%s241 + $0x3f8] sm:$0xff]
        %v424 = vld [vmem:[%s241 + $0x400] sm:$0xff]
        %v425 = vld [vmem:[%s241 + $0x408] sm:$0xff]
        %v426 = vld [vmem:[%s241 + $0x410] sm:$0xff]
        %v427 = vld [vmem:[%s241 + $0x418] sm:$0xff]
        %v428 = vld [vmem:[%s241 + $0x420] sm:$0xff]
        %v429 = vld [vmem:[%s241 + $0x428] sm:$0xff]
        %v430 = vld [vmem:[%s241 + $0x430] sm:$0xff]
        %v431 = vld [vmem:[%s241 + $0x438] sm:$0xff]
        %v432 = vld [vmem:[%s241 + $0x440] sm:$0xff]
        %v433 = vld [vmem:[%s241 + $0x448] sm:$0xff]
        %v434 = vld [vmem:[%s241 + $0x450] sm:$0xff]
        %v435 = vld [vmem:[%s241 + $0x458] sm:$0xff]
        %v436 = vld [vmem:[%s241 + $0x460] sm:$0xff]
        %v437 = vld [vmem:[%s241 + $0x468] sm:$0xff]
        %v438 = vld [vmem:[%s241 + $0x470] sm:$0xff]
        %v439 = vld [vmem:[%s241 + $0x478] sm:$0xff]
        %v440 = vld [vmem:[%s241 + $0x480] sm:$0xff]
        %v441 = vld [vmem:[%s241 + $0x488] sm:$0xff]
        %v442 = vld [vmem:[%s241 + $0x490] sm:$0xff]
        %v443 = vld [vmem:[%s241 + $0x498] sm:$0xff]
        %v444 = vld [vmem:[%s241 + $0x4a0] sm:$0xff]
        %v445 = vld [vmem:[%s241 + $0x4a8] sm:$0xff]
        %v446 = vld [vmem:[%s241 + $0x4b0] sm:$0xff]
        %v447 = vld [vmem:[%s241 + $0x4b8] sm:$0xff]
        %v448 = vld [vmem:[%s241 + $0x4c0] sm:$0xff]
        %v449 = vld [vmem:[%s241 + $0x4c8] sm:$0xff]
        %v450 = vld [vmem:[%s241 + $0x4d0] sm:$0xff]
        %v451 = vld [vmem:[%s241 + $0x4d8] sm:$0xff]
        %v452 = vld [vmem:[%s241 + $0x4e0] sm:$0xff]
        %v453 = vld [vmem:[%s241 + $0x4e8] sm:$0xff]
        %v454 = vld [vmem:[%s241 + $0x4f0] sm:$0xff]
        %v455 = vld [vmem:[%s241 + $0x4f8] sm:$0xff]
        %v456 = vld [vmem:[%s241 + $0x500] sm:$0xff]
        %v457 = vld [vmem:[%s241 + $0x508] sm:$0xff]
        %v458 = vld [vmem:[%s241 + $0x510] sm:$0xff]
        %v459 = vld [vmem:[%s241 + $0x518] sm:$0xff]
        %v460 = vld [vmem:[%s241 + $0x520] sm:$0xff]
        %v461 = vld [vmem:[%s241 + $0x528] sm:$0xff]
        %v462 = vld [vmem:[%s241 + $0x530] sm:$0xff]
        %v463 = vld [vmem:[%s241 + $0x538] sm:$0xff]
        %v464 = vld [vmem:[%s241 + $0x540] sm:$0xff]
        %v465 = vld [vmem:[%s241 + $0x548] sm:$0xff]
        %v466 = vld [vmem:[%s241 + $0x550] sm:$0xff]
        %v467 = vld [vmem:[%s241 + $0x558] sm:$0xff]
        %v468 = vld [vmem:[%s241 + $0x560] sm:$0xff]
        %v469 = vld [vmem:[%s241 + $0x568] sm:$0xff]
        %v470 = vld [vmem:[%s241 + $0x570] sm:$0xff]
        %v471 = vld [vmem:[%s241 + $0x578] sm:$0xff]
        %v472 = vld [vmem:[%s241 + $0x580] sm:$0xff]
        %v473 = vld [vmem:[%s241 + $0x588] sm:$0xff]
        %v474 = vld [vmem:[%s241 + $0x590] sm:$0xff]
        %v475 = vld [vmem:[%s241 + $0x598] sm:$0xff]
        %v476 = vld [vmem:[%s241 + $0x5a0] sm:$0xff]
        %v477 = vld [vmem:[%s241 + $0x5a8] sm:$0xff]
        %v478 = vld [vmem:[%s241 + $0x5b0] sm:$0xff]
        %v479 = vld [vmem:[%s241 + $0x5b8] sm:$0xff]
        %v480 = vld [vmem:[%s241 + $0x5c0] sm:$0xff]
        %v481 = vld [vmem:[%s241 + $0x5c8] sm:$0xff]
        %v482 = vld [vmem:[%s241 + $0x5d0] sm:$0xff]
        %v483 = vld [vmem:[%s241 + $0x5d8] sm:$0xff]
        %v484 = vld [vmem:[%s241 + $0x5e0] sm:$0xff]
        %v485 = vld [vmem:[%s241 + $0x5e8] sm:$0xff]
        %v486 = vld [vmem:[%s241 + $0x5f0] sm:$0xff]
        %v487 = vld [vmem:[%s241 + $0x5f8] sm:$0xff]
        %v488 = vld [vmem:[%s241 + $0x600] sm:$0xff]
        %v489 = vld [vmem:[%s241 + $0x608] sm:$0xff]
        %v490 = vld [vmem:[%s241 + $0x610] sm:$0xff]
        %v491 = vld [vmem:[%s241 + $0x618] sm:$0xff]
        %v492 = vld [vmem:[%s241 + $0x620] sm:$0xff]
        %v493 = vld [vmem:[%s241 + $0x628] sm:$0xff]
        %v494 = vld [vmem:[%s241 + $0x630] sm:$0xff]
        %v495 = vld [vmem:[%s241 + $0x638] sm:$0xff]
        %v496 = vld [vmem:[%s241 + $0x640] sm:$0xff]
        %v497 = vld [vmem:[%s241 + $0x648] sm:$0xff]
        %v498 = vld [vmem:[%s241 + $0x650] sm:$0xff]
        %v499 = vld [vmem:[%s241 + $0x658] sm:$0xff]
        %v500 = vld [vmem:[%s241 + $0x660] sm:$0xff]
        %v501 = vld [vmem:[%s241 + $0x668] sm:$0xff]
        %v502 = vld [vmem:[%s241 + $0x670] sm:$0xff]
        %v503 = vld [vmem:[%s241 + $0x678] sm:$0xff]
        %v504 = vld [vmem:[%s241 + $0x680] sm:$0xff]
        %v505 = vld [vmem:[%s241 + $0x688] sm:$0xff]
        %v506 = vld [vmem:[%s241 + $0x690] sm:$0xff]
        %v507 = vld [vmem:[%s241 + $0x698] sm:$0xff]
        %v508 = vld [vmem:[%s241 + $0x6a0] sm:$0xff]
        %v509 = vld [vmem:[%s241 + $0x6a8] sm:$0xff]
        %v510 = vld [vmem:[%s241 + $0x6b0] sm:$0xff]
        %v511 = vld [vmem:[%s241 + $0x6b8] sm:$0xff]
        %v512 = vld [vmem:[%s241 + $0x6c0] sm:$0xff]
        %v513 = vld [vmem:[%s241 + $0x6c8] sm:$0xff]
        %v514 = vld [vmem:[%s241 + $0x6d0] sm:$0xff]
        %v515 = vld [vmem:[%s241 + $0x6d8] sm:$0xff]
        %v516 = vld [vmem:[%s241 + $0x6e0] sm:$0xff]
        %v517 = vld [vmem:[%s241 + $0x6e8] sm:$0xff]
        %v518 = vld [vmem:[%s241 + $0x6f0] sm:$0xff]
        %v519 = vld [vmem:[%s241 + $0x6f8] sm:$0xff]
        %v520 = vld [vmem:[%s241 + $0x700] sm:$0xff]
        %v521 = vld [vmem:[%s241 + $0x708] sm:$0xff]
        %v522 = vld [vmem:[%s241 + $0x710] sm:$0xff]
        %v523 = vld [vmem:[%s241 + $0x718] sm:$0xff]
        %v524 = vld [vmem:[%s241 + $0x720] sm:$0xff]
        %v525 = vld [vmem:[%s241 + $0x728] sm:$0xff]
        %v526 = vld [vmem:[%s241 + $0x730] sm:$0xff]
        %v527 = vld [vmem:[%s241 + $0x738] sm:$0xff]
        %v528 = vld [vmem:[%s241 + $0x740] sm:$0xff]
        %v529 = vld [vmem:[%s241 + $0x748] sm:$0xff]
        %v530 = vld [vmem:[%s241 + $0x750] sm:$0xff]
        %v531 = vld [vmem:[%s241 + $0x758] sm:$0xff]
        %v532 = vld [vmem:[%s241 + $0x760] sm:$0xff]
        %v533 = vld [vmem:[%s241 + $0x768] sm:$0xff]
        %v534 = vld [vmem:[%s241 + $0x770] sm:$0xff]
        %v535 = vld [vmem:[%s241 + $0x778] sm:$0xff]
        %v536 = vld [vmem:[%s241 + $0x780] sm:$0xff]
        %v537 = vld [vmem:[%s241 + $0x788] sm:$0xff]
        %v538 = vld [vmem:[%s241 + $0x790] sm:$0xff]
        %v539 = vld [vmem:[%s241 + $0x798] sm:$0xff]
        %v540 = vld [vmem:[%s241 + $0x7a0] sm:$0xff]
        %v541 = vld [vmem:[%s241 + $0x7a8] sm:$0xff]
        %v542 = vld [vmem:[%s241 + $0x7b0] sm:$0xff]
        %v543 = vld [vmem:[%s241 + $0x7b8] sm:$0xff]
        %v544 = vld [vmem:[%s241 + $0x7c0] sm:$0xff]
        %v545 = vld [vmem:[%s241 + $0x7c8] sm:$0xff]
        %v546 = vld [vmem:[%s241 + $0x7d0] sm:$0xff]
        %v547 = vld [vmem:[%s241 + $0x7d8] sm:$0xff]
        %v548 = vld [vmem:[%s241 + $0x7e0] sm:$0xff]
        %v549 = vld [vmem:[%s241 + $0x7e8] sm:$0xff]
        %v550 = vld [vmem:[%s241 + $0x7f0] sm:$0xff]
        %v551 = vld [vmem:[%s241 + $0x7f8] sm:$0xff]
        %v552 = vld [vmem:[#allocation3] ss:$2 sm:$0xf]
        %s553 = scalar_lea.vmem [#allocation3], 8
        %v554 = vld [vmem:[%s553] ss:$2 sm:$0xf]
        %s555 = scalar_lea.vmem [#allocation3], 16
        %v556 = vld [vmem:[%s555] ss:$2 sm:$0xf]
        %s557 = scalar_lea.vmem [#allocation3], 24
        %v558 = vld [vmem:[%s557] ss:$2 sm:$0xf]
        %s559 = scalar_lea.vmem [#allocation3], 32
        %v560 = vld [vmem:[%s559] ss:$2 sm:$0xf]
        %s561 = scalar_lea.vmem [#allocation3], 40
        %v562 = vld [vmem:[%s561] ss:$2 sm:$0xf]
        %s563 = scalar_lea.vmem [#allocation3], 48
        %v564 = vld [vmem:[%s563] ss:$2 sm:$0xf]
        %s565 = scalar_lea.vmem [#allocation3], 56
        %v566 = vld [vmem:[%s565] ss:$2 sm:$0xf]
        %v567 = vld [vmem:[#allocation2] sm:$0xff]
        %v568 = vld [vmem:[#allocation2 + $0x8] sm:$0xff]
        %v569 = vld [vmem:[#allocation2 + $0x10] sm:$0xff]
        %v570 = vld [vmem:[#allocation2 + $0x18] sm:$0xff]
        %v579 = vcombine.low %v552, %v554
        %v580 = vcombine.low %v556, %v558
        %v581 = vcombine.low %v560, %v562
        %v582 = vcombine.low %v564, %v566
        %v584 = vunpack.c.l.s4 1966171168
        %v585 = vunpack.c.0.s8 %v584
        %v586 = vlaneseq
        %v587 = vshrl.u32 %v586, 7
        %v588 = vsub.s32 %v585, %v587
        %v589 = vrot.slane %v579, %v588
        %v591 = vunpack.c.l.s4 1966171168
        %v592 = vunpack.c.0.s8 %v591
        %v593 = vlaneseq
        %v594 = vshrl.u32 %v593, 7
        %v595 = vsub.s32 %v592, %v594
        %v596 = vrot.slane %v580, %v595
        %v598 = vunpack.c.l.s4 1966171168
        %v599 = vunpack.c.0.s8 %v598
        %v600 = vlaneseq
        %v601 = vshrl.u32 %v600, 7
        %v602 = vsub.s32 %v599, %v601
        %v603 = vrot.slane %v581, %v602
        %v605 = vunpack.c.l.s4 1966171168
        %v606 = vunpack.c.0.s8 %v605
        %v607 = vlaneseq
        %v608 = vshrl.u32 %v607, 7
        %v609 = vsub.s32 %v606, %v608
        %v610 = vrot.slane %v582, %v609
        %v611 = vcombine.low %v589, %v596
        %v612 = vcombine.high %v589, %v596
        %v613 = vcombine.low %v603, %v610
        %v614 = vcombine.high %v603, %v610
        %v616 = vunpack.c.l.s4 1966171168
        %v617 = vunpack.c.0.s8 %v616
        %v618 = vlaneseq
        %v619 = vshrl.u32 %v618, 7
        %v620 = vsub.s32 %v617, %v619
        %v621 = vrot.slane %v611, %v620
        %v623 = vunpack.c.l.s4 1966171168
        %v624 = vunpack.c.0.s8 %v623
        %v625 = vlaneseq
        %v626 = vshrl.u32 %v625, 7
        %v627 = vsub.s32 %v624, %v626
        %v628 = vrot.slane %v612, %v627
        %v630 = vunpack.c.l.s4 1966171168
        %v631 = vunpack.c.0.s8 %v630
        %v632 = vlaneseq
        %v633 = vshrl.u32 %v632, 7
        %v634 = vsub.s32 %v631, %v633
        %v635 = vrot.slane %v613, %v634
        %v637 = vunpack.c.l.s4 1966171168
        %v638 = vunpack.c.0.s8 %v637
        %v639 = vlaneseq
        %v640 = vshrl.u32 %v639, 7
        %v641 = vsub.s32 %v638, %v640
        %v642 = vrot.slane %v614, %v641
        %v643 = vcombine.low %v621, %v635
        %v644 = vcombine.high %v621, %v635
        %v645 = vcombine.low %v628, %v642
        %v646 = vcombine.high %v628, %v642
        %651 = vmatprep.subr.mxu0 %v357
        %652 = vmatpush1.msra.mxu0 %v356
        %653 = vmatprep.subr.mxu0 %v353
        %654 = vmatpush1.msra.mxu0 %v352
        %655 = vmatprep.subr.mxu0 %v349
        %656 = vmatpush1.msra.mxu0 %v348
        %657 = vmatprep.subr.mxu0 %v345
        %658 = vmatpush1.msra.mxu0 %v344
        %659 = vmatprep.subr.mxu0 %v341
        %660 = vmatpush1.msra.mxu0 %v340
        %661 = vmatprep.subr.mxu0 %v337
        %662 = vmatpush1.msra.mxu0 %v336
        %663 = vmatprep.subr.mxu0 %v333
        %664 = vmatpush1.msra.mxu0 %v332
        %665 = vmatprep.subr.mxu0 %v329
        %666 = vmatpush1.msra.mxu0 %v328
        %667 = vmatprep.subr.mxu0 %v325
        %668 = vmatpush1.msra.mxu0 %v324
        %669 = vmatprep.subr.mxu0 %v321
        %670 = vmatpush1.msra.mxu0 %v320
        %671 = vmatprep.subr.mxu0 %v317
        %672 = vmatpush1.msra.mxu0 %v316
        %673 = vmatprep.subr.mxu0 %v313
        %674 = vmatpush1.msra.mxu0 %v312
        %675 = vmatprep.subr.mxu0 %v309
        %676 = vmatpush1.msra.mxu0 %v308
        %677 = vmatprep.subr.mxu0 %v305
        %678 = vmatpush1.msra.mxu0 %v304
        %679 = vmatprep.subr.mxu0 %v301
        %680 = vmatpush1.msra.mxu0 %v300
        %681 = vmatprep.subr.mxu0 %v297
        %682 = vmatpush1.msra.mxu0 %v296
        %683 = vmatprep.subr.mxu0 %v421
        %684 = vmatpush2.msra.mxu0 %v420
        %685 = vmatprep.subr.mxu0 %v417
        %686 = vmatpush2.msra.mxu0 %v416
        %687 = vmatprep.subr.mxu0 %v413
        %688 = vmatpush2.msra.mxu0 %v412
        %689 = vmatprep.subr.mxu0 %v409
        %690 = vmatpush2.msra.mxu0 %v408
        %691 = vmatprep.subr.mxu0 %v405
        %692 = vmatpush2.msra.mxu0 %v404
        %693 = vmatprep.subr.mxu0 %v401
        %694 = vmatpush2.msra.mxu0 %v400
        %695 = vmatprep.subr.mxu0 %v397
        %696 = vmatpush2.msra.mxu0 %v396
        %697 = vmatprep.subr.mxu0 %v393
        %698 = vmatpush2.msra.mxu0 %v392
        %699 = vmatprep.subr.mxu0 %v389
        %700 = vmatpush2.msra.mxu0 %v388
        %701 = vmatprep.subr.mxu0 %v385
        %702 = vmatpush2.msra.mxu0 %v384
        %703 = vmatprep.subr.mxu0 %v381
        %704 = vmatpush2.msra.mxu0 %v380
        %705 = vmatprep.subr.mxu0 %v377
        %706 = vmatpush2.msra.mxu0 %v376
        %707 = vmatprep.subr.mxu0 %v373
        %708 = vmatpush2.msra.mxu0 %v372
        %709 = vmatprep.subr.mxu0 %v369
        %710 = vmatpush2.msra.mxu0 %v368
        %711 = vmatprep.subr.mxu0 %v365
        %712 = vmatpush2.msra.mxu0 %v364
        %713 = vmatprep.subr.mxu0 %v361
        %714 = vmatpush2.msra.mxu0 %v360
        %715 = vmatprep.mubr.f32.mxu0 %v645
        %716 = vmatmul.mubr.f32.gmra.mxu0 %v643
        %v717 = vpop.f32.mrf.mxu0
        %v718 = vadd.f32 0.0, %v717
        %v719 = vpop.f32.mrf.mxu0
        %v720 = vadd.f32 0.0, %v719
        %721 = vdwg.mxu0
        %722 = vmatprep.subr.mxu0 %v485
        %723 = vmatpush1.msra.mxu0 %v484
        %724 = vmatprep.subr.mxu0 %v481
        %725 = vmatpush1.msra.mxu0 %v480
        %726 = vmatprep.subr.mxu0 %v477
        %727 = vmatpush1.msra.mxu0 %v476
        %728 = vmatprep.subr.mxu0 %v473
        %729 = vmatpush1.msra.mxu0 %v472
        %730 = vmatprep.subr.mxu0 %v469
        %731 = vmatpush1.msra.mxu0 %v468
        %732 = vmatprep.subr.mxu0 %v465
        %733 = vmatpush1.msra.mxu0 %v464
        %734 = vmatprep.subr.mxu0 %v461
        %735 = vmatpush1.msra.mxu0 %v460
        %736 = vmatprep.subr.mxu0 %v457
        %737 = vmatpush1.msra.mxu0 %v456
        %738 = vmatprep.subr.mxu0 %v453
        %739 = vmatpush1.msra.mxu0 %v452
        %740 = vmatprep.subr.mxu0 %v449
        %741 = vmatpush1.msra.mxu0 %v448
        %742 = vmatprep.subr.mxu0 %v445
        %743 = vmatpush1.msra.mxu0 %v444
        %744 = vmatprep.subr.mxu0 %v441
        %745 = vmatpush1.msra.mxu0 %v440
        %746 = vmatprep.subr.mxu0 %v437
        %747 = vmatpush1.msra.mxu0 %v436
        %748 = vmatprep.subr.mxu0 %v433
        %749 = vmatpush1.msra.mxu0 %v432
        %750 = vmatprep.subr.mxu0 %v429
        %751 = vmatpush1.msra.mxu0 %v428
        %752 = vmatprep.subr.mxu0 %v425
        %753 = vmatpush1.msra.mxu0 %v424
        %754 = vmatprep.subr.mxu0 %v549
        %755 = vmatpush2.msra.mxu0 %v548
        %756 = vmatprep.subr.mxu0 %v545
        %757 = vmatpush2.msra.mxu0 %v544
        %758 = vmatprep.subr.mxu0 %v541
        %759 = vmatpush2.msra.mxu0 %v540
        %760 = vmatprep.subr.mxu0 %v537
        %761 = vmatpush2.msra.mxu0 %v536
        %762 = vmatprep.subr.mxu0 %v533
        %763 = vmatpush2.msra.mxu0 %v532
        %764 = vmatprep.subr.mxu0 %v529
        %765 = vmatpush2.msra.mxu0 %v528
        %766 = vmatprep.subr.mxu0 %v525
        %767 = vmatpush2.msra.mxu0 %v524
        %768 = vmatprep.subr.mxu0 %v521
        %769 = vmatpush2.msra.mxu0 %v520
        %770 = vmatprep.subr.mxu0 %v517
        %771 = vmatpush2.msra.mxu0 %v516
        %772 = vmatprep.subr.mxu0 %v513
        %773 = vmatpush2.msra.mxu0 %v512
        %774 = vmatprep.subr.mxu0 %v509
        %775 = vmatpush2.msra.mxu0 %v508
        %776 = vmatprep.subr.mxu0 %v505
        %777 = vmatpush2.msra.mxu0 %v504
        %778 = vmatprep.subr.mxu0 %v501
        %779 = vmatpush2.msra.mxu0 %v500
        %780 = vmatprep.subr.mxu0 %v497
        %781 = vmatpush2.msra.mxu0 %v496
        %782 = vmatprep.subr.mxu0 %v493
        %783 = vmatpush2.msra.mxu0 %v492
        %784 = vmatprep.subr.mxu0 %v489
        %785 = vmatpush2.msra.mxu0 %v488
        %786 = vmatprep.mubr.f32.mxu0 %v646
        %787 = vmatmul.mubr.f32.gmra.mxu0 %v644
        %v788 = vpop.f32.mrf.mxu0
        %v789 = vadd.f32 %v718, %v788
        %v790 = vpop.f32.mrf.mxu0
        %v791 = vadd.f32 %v720, %v790
        %792 = vdwg.mxu0
        %793 = vmatprep.subr.mxu0 %v359
        %794 = vmatpush1.msra.mxu0 %v358
        %795 = vmatprep.subr.mxu0 %v355
        %796 = vmatpush1.msra.mxu0 %v354
        %797 = vmatprep.subr.mxu0 %v351
        %798 = vmatpush1.msra.mxu0 %v350
        %799 = vmatprep.subr.mxu0 %v347
        %800 = vmatpush1.msra.mxu0 %v346
        %801 = vmatprep.subr.mxu0 %v343
        %802 = vmatpush1.msra.mxu0 %v342
        %803 = vmatprep.subr.mxu0 %v339
        %804 = vmatpush1.msra.mxu0 %v338
        %805 = vmatprep.subr.mxu0 %v335
        %806 = vmatpush1.msra.mxu0 %v334
        %807 = vmatprep.subr.mxu0 %v331
        %808 = vmatpush1.msra.mxu0 %v330
        %809 = vmatprep.subr.mxu0 %v327
        %810 = vmatpush1.msra.mxu0 %v326
        %811 = vmatprep.subr.mxu0 %v323
        %812 = vmatpush1.msra.mxu0 %v322
        %813 = vmatprep.subr.mxu0 %v319
        %814 = vmatpush1.msra.mxu0 %v318
        %815 = vmatprep.subr.mxu0 %v315
        %816 = vmatpush1.msra.mxu0 %v314
        %817 = vmatprep.subr.mxu0 %v311
        %818 = vmatpush1.msra.mxu0 %v310
        %819 = vmatprep.subr.mxu0 %v307
        %820 = vmatpush1.msra.mxu0 %v306
        %821 = vmatprep.subr.mxu0 %v303
        %822 = vmatpush1.msra.mxu0 %v302
        %823 = vmatprep.subr.mxu0 %v299
        %824 = vmatpush1.msra.mxu0 %v298
        %825 = vmatprep.subr.mxu0 %v423
        %826 = vmatpush2.msra.mxu0 %v422
        %827 = vmatprep.subr.mxu0 %v419
        %828 = vmatpush2.msra.mxu0 %v418
        %829 = vmatprep.subr.mxu0 %v415
        %830 = vmatpush2.msra.mxu0 %v414
        %831 = vmatprep.subr.mxu0 %v411
        %832 = vmatpush2.msra.mxu0 %v410
        %833 = vmatprep.subr.mxu0 %v407
        %834 = vmatpush2.msra.mxu0 %v406
        %835 = vmatprep.subr.mxu0 %v403
        %836 = vmatpush2.msra.mxu0 %v402
        %837 = vmatprep.subr.mxu0 %v399
        %838 = vmatpush2.msra.mxu0 %v398
        %839 = vmatprep.subr.mxu0 %v395
        %840 = vmatpush2.msra.mxu0 %v394
        %841 = vmatprep.subr.mxu0 %v391
        %842 = vmatpush2.msra.mxu0 %v390
        %843 = vmatprep.subr.mxu0 %v387
        %844 = vmatpush2.msra.mxu0 %v386
        %845 = vmatprep.subr.mxu0 %v383
        %846 = vmatpush2.msra.mxu0 %v382
        %847 = vmatprep.subr.mxu0 %v379
        %848 = vmatpush2.msra.mxu0 %v378
        %849 = vmatprep.subr.mxu0 %v375
        %850 = vmatpush2.msra.mxu0 %v374
        %851 = vmatprep.subr.mxu0 %v371
        %852 = vmatpush2.msra.mxu0 %v370
        %853 = vmatprep.subr.mxu0 %v367
        %854 = vmatpush2.msra.mxu0 %v366
        %855 = vmatprep.subr.mxu0 %v363
        %856 = vmatpush2.msra.mxu0 %v362
        %857 = vmatprep.mubr.f32.mxu0 %v645
        %858 = vmatmul.mubr.f32.gmra.mxu0 %v643
        %v859 = vpop.f32.mrf.mxu0
        %v860 = vadd.f32 0.0, %v859
        %v861 = vpop.f32.mrf.mxu0
        %v862 = vadd.f32 0.0, %v861
        %863 = vdwg.mxu0
        %864 = vmatprep.subr.mxu0 %v487
        %865 = vmatpush1.msra.mxu0 %v486
        %866 = vmatprep.subr.mxu0 %v483
        %867 = vmatpush1.msra.mxu0 %v482
        %868 = vmatprep.subr.mxu0 %v479
        %869 = vmatpush1.msra.mxu0 %v478
        %870 = vmatprep.subr.mxu0 %v475
        %871 = vmatpush1.msra.mxu0 %v474
        %872 = vmatprep.subr.mxu0 %v471
        %873 = vmatpush1.msra.mxu0 %v470
        %874 = vmatprep.subr.mxu0 %v467
        %875 = vmatpush1.msra.mxu0 %v466
        %876 = vmatprep.subr.mxu0 %v463
        %877 = vmatpush1.msra.mxu0 %v462
        %878 = vmatprep.subr.mxu0 %v459
        %879 = vmatpush1.msra.mxu0 %v458
        %880 = vmatprep.subr.mxu0 %v455
        %881 = vmatpush1.msra.mxu0 %v454
        %882 = vmatprep.subr.mxu0 %v451
        %883 = vmatpush1.msra.mxu0 %v450
        %884 = vmatprep.subr.mxu0 %v447
        %885 = vmatpush1.msra.mxu0 %v446
        %886 = vmatprep.subr.mxu0 %v443
        %887 = vmatpush1.msra.mxu0 %v442
        %888 = vmatprep.subr.mxu0 %v439
        %889 = vmatpush1.msra.mxu0 %v438
        %890 = vmatprep.subr.mxu0 %v435
        %891 = vmatpush1.msra.mxu0 %v434
        %892 = vmatprep.subr.mxu0 %v431
        %893 = vmatpush1.msra.mxu0 %v430
        %894 = vmatprep.subr.mxu0 %v427
        %895 = vmatpush1.msra.mxu0 %v426
        %896 = vmatprep.subr.mxu0 %v551
        %897 = vmatpush2.msra.mxu0 %v550
        %898 = vmatprep.subr.mxu0 %v547
        %899 = vmatpush2.msra.mxu0 %v546
        %900 = vmatprep.subr.mxu0 %v543
        %901 = vmatpush2.msra.mxu0 %v542
        %902 = vmatprep.subr.mxu0 %v539
        %903 = vmatpush2.msra.mxu0 %v538
        %904 = vmatprep.subr.mxu0 %v535
        %905 = vmatpush2.msra.mxu0 %v534
        %906 = vmatprep.subr.mxu0 %v531
        %907 = vmatpush2.msra.mxu0 %v530
        %908 = vmatprep.subr.mxu0 %v527
        %909 = vmatpush2.msra.mxu0 %v526
        %910 = vmatprep.subr.mxu0 %v523
        %911 = vmatpush2.msra.mxu0 %v522
        %912 = vmatprep.subr.mxu0 %v519
        %913 = vmatpush2.msra.mxu0 %v518
        %914 = vmatprep.subr.mxu0 %v515
        %915 = vmatpush2.msra.mxu0 %v514
        %916 = vmatprep.subr.mxu0 %v511
        %917 = vmatpush2.msra.mxu0 %v510
        %918 = vmatprep.subr.mxu0 %v507
        %919 = vmatpush2.msra.mxu0 %v506
        %920 = vmatprep.subr.mxu0 %v503
        %921 = vmatpush2.msra.mxu0 %v502
        %922 = vmatprep.subr.mxu0 %v499
        %923 = vmatpush2.msra.mxu0 %v498
        %924 = vmatprep.subr.mxu0 %v495
        %925 = vmatpush2.msra.mxu0 %v494
        %926 = vmatprep.subr.mxu0 %v491
        %927 = vmatpush2.msra.mxu0 %v490
        %928 = vmatprep.mubr.f32.mxu0 %v646
        %929 = vmatmul.mubr.f32.gmra.mxu0 %v644
        %v930 = vpop.f32.mrf.mxu0
        %v931 = vadd.f32 %v860, %v930
        %v932 = vpop.f32.mrf.mxu0
        %v933 = vadd.f32 %v862, %v932
        %934 = vdwg.mxu0
        %v935 = vadd.f32 %v567, %v789
        %v936 = vadd.f32 %v568, %v791
        %v937 = vadd.f32 %v569, %v931
        %v938 = vadd.f32 %v570, %v933
        %939 = vst [vmem:[#allocation2] sm:$0xff] %v935
        %940 = vst [vmem:[#allocation2 + $0x8] sm:$0xff] %v936
        %941 = vst [vmem:[#allocation2 + $0x10] sm:$0xff] %v937
        %942 = vst [vmem:[#allocation2 + $0x18] sm:$0xff] %v938
        %s943 = scalar_lea.vmem [#allocation3], 1
        %v944 = vld [vmem:[%s943] ss:$2 sm:$0xf]
        %s945 = scalar_lea.vmem [#allocation3], 9
        %v946 = vld [vmem:[%s945] ss:$2 sm:$0xf]
        %s947 = scalar_lea.vmem [#allocation3], 17
        %v948 = vld [vmem:[%s947] ss:$2 sm:$0xf]
        %s949 = scalar_lea.vmem [#allocation3], 25
        %v950 = vld [vmem:[%s949] ss:$2 sm:$0xf]
        %s951 = scalar_lea.vmem [#allocation3], 33
        %v952 = vld [vmem:[%s951] ss:$2 sm:$0xf]
        %s953 = scalar_lea.vmem [#allocation3], 41
        %v954 = vld [vmem:[%s953] ss:$2 sm:$0xf]
        %s955 = scalar_lea.vmem [#allocation3], 49
        %v956 = vld [vmem:[%s955] ss:$2 sm:$0xf]
        %s957 = scalar_lea.vmem [#allocation3], 57
        %v958 = vld [vmem:[%s957] ss:$2 sm:$0xf]
        %s959 = scalar_lea.vmem [#allocation2], 32
        %v960 = vld [vmem:[%s959] sm:$0xff]
        %v961 = vld [vmem:[%s959 + $0x8] sm:$0xff]
        %v962 = vld [vmem:[%s959 + $0x10] sm:$0xff]
        %v963 = vld [vmem:[%s959 + $0x18] sm:$0xff]
        %v972 = vcombine.low %v944, %v946
        %v973 = vcombine.low %v948, %v950
        %v974 = vcombine.low %v952, %v954
        %v975 = vcombine.low %v956, %v958
        %v977 = vunpack.c.l.s4 1966171168
        %v978 = vunpack.c.0.s8 %v977
        %v979 = vlaneseq
        %v980 = vshrl.u32 %v979, 7
        %v981 = vsub.s32 %v978, %v980
        %v982 = vrot.slane %v972, %v981
        %v984 = vunpack.c.l.s4 1966171168
        %v985 = vunpack.c.0.s8 %v984
        %v986 = vlaneseq
        %v987 = vshrl.u32 %v986, 7
        %v988 = vsub.s32 %v985, %v987
        %v989 = vrot.slane %v973, %v988
        %v991 = vunpack.c.l.s4 1966171168
        %v992 = vunpack.c.0.s8 %v991
        %v993 = vlaneseq
        %v994 = vshrl.u32 %v993, 7
        %v995 = vsub.s32 %v992, %v994
        %v996 = vrot.slane %v974, %v995
        %v998 = vunpack.c.l.s4 1966171168
        %v999 = vunpack.c.0.s8 %v998
        %v1000 = vlaneseq
        %v1001 = vshrl.u32 %v1000, 7
        %v1002 = vsub.s32 %v999, %v1001
        %v1003 = vrot.slane %v975, %v1002
        %v1004 = vcombine.low %v982, %v989
        %v1005 = vcombine.high %v982, %v989
        %v1006 = vcombine.low %v996, %v1003
        %v1007 = vcombine.high %v996, %v1003
        %v1009 = vunpack.c.l.s4 1966171168
        %v1010 = vunpack.c.0.s8 %v1009
        %v1011 = vlaneseq
        %v1012 = vshrl.u32 %v1011, 7
        %v1013 = vsub.s32 %v1010, %v1012
        %v1014 = vrot.slane %v1004, %v1013
        %v1016 = vunpack.c.l.s4 1966171168
        %v1017 = vunpack.c.0.s8 %v1016
        %v1018 = vlaneseq
        %v1019 = vshrl.u32 %v1018, 7
        %v1020 = vsub.s32 %v1017, %v1019
        %v1021 = vrot.slane %v1005, %v1020
        %v1023 = vunpack.c.l.s4 1966171168
        %v1024 = vunpack.c.0.s8 %v1023
        %v1025 = vlaneseq
        %v1026 = vshrl.u32 %v1025, 7
        %v1027 = vsub.s32 %v1024, %v1026
        %v1028 = vrot.slane %v1006, %v1027
        %v1030 = vunpack.c.l.s4 1966171168
        %v1031 = vunpack.c.0.s8 %v1030
        %v1032 = vlaneseq
        %v1033 = vshrl.u32 %v1032, 7
        %v1034 = vsub.s32 %v1031, %v1033
        %v1035 = vrot.slane %v1007, %v1034
        %v1036 = vcombine.low %v1014, %v1028
        %v1037 = vcombine.high %v1014, %v1028
        %v1038 = vcombine.low %v1021, %v1035
        %v1039 = vcombine.high %v1021, %v1035
        %1044 = vmatprep.subr.mxu0 %v357
        %1045 = vmatpush1.msra.mxu0 %v356
        %1046 = vmatprep.subr.mxu0 %v353
        %1047 = vmatpush1.msra.mxu0 %v352
        %1048 = vmatprep.subr.mxu0 %v349
        %1049 = vmatpush1.msra.mxu0 %v348
        %1050 = vmatprep.subr.mxu0 %v345
        %1051 = vmatpush1.msra.mxu0 %v344
        %1052 = vmatprep.subr.mxu0 %v341
        %1053 = vmatpush1.msra.mxu0 %v340
        %1054 = vmatprep.subr.mxu0 %v337
        %1055 = vmatpush1.msra.mxu0 %v336
        %1056 = vmatprep.subr.mxu0 %v333
        %1057 = vmatpush1.msra.mxu0 %v332
        %1058 = vmatprep.subr.mxu0 %v329
        %1059 = vmatpush1.msra.mxu0 %v328
        %1060 = vmatprep.subr.mxu0 %v325
        %1061 = vmatpush1.msra.mxu0 %v324
        %1062 = vmatprep.subr.mxu0 %v321
        %1063 = vmatpush1.msra.mxu0 %v320
        %1064 = vmatprep.subr.mxu0 %v317
        %1065 = vmatpush1.msra.mxu0 %v316
        %1066 = vmatprep.subr.mxu0 %v313
        %1067 = vmatpush1.msra.mxu0 %v312
        %1068 = vmatprep.subr.mxu0 %v309
        %1069 = vmatpush1.msra.mxu0 %v308
        %1070 = vmatprep.subr.mxu0 %v305
        %1071 = vmatpush1.msra.mxu0 %v304
        %1072 = vmatprep.subr.mxu0 %v301
        %1073 = vmatpush1.msra.mxu0 %v300
        %1074 = vmatprep.subr.mxu0 %v297
        %1075 = vmatpush1.msra.mxu0 %v296
        %1076 = vmatprep.subr.mxu0 %v421
        %1077 = vmatpush2.msra.mxu0 %v420
        %1078 = vmatprep.subr.mxu0 %v417
        %1079 = vmatpush2.msra.mxu0 %v416
        %1080 = vmatprep.subr.mxu0 %v413
        %1081 = vmatpush2.msra.mxu0 %v412
        %1082 = vmatprep.subr.mxu0 %v409
        %1083 = vmatpush2.msra.mxu0 %v408
        %1084 = vmatprep.subr.mxu0 %v405
        %1085 = vmatpush2.msra.mxu0 %v404
        %1086 = vmatprep.subr.mxu0 %v401
        %1087 = vmatpush2.msra.mxu0 %v400
        %1088 = vmatprep.subr.mxu0 %v397
        %1089 = vmatpush2.msra.mxu0 %v396
        %1090 = vmatprep.subr.mxu0 %v393
        %1091 = vmatpush2.msra.mxu0 %v392
        %1092 = vmatprep.subr.mxu0 %v389
        %1093 = vmatpush2.msra.mxu0 %v388
        %1094 = vmatprep.subr.mxu0 %v385
        %1095 = vmatpush2.msra.mxu0 %v384
        %1096 = vmatprep.subr.mxu0 %v381
        %1097 = vmatpush2.msra.mxu0 %v380
        %1098 = vmatprep.subr.mxu0 %v377
        %1099 = vmatpush2.msra.mxu0 %v376
        %1100 = vmatprep.subr.mxu0 %v373
        %1101 = vmatpush2.msra.mxu0 %v372
        %1102 = vmatprep.subr.mxu0 %v369
        %1103 = vmatpush2.msra.mxu0 %v368
        %1104 = vmatprep.subr.mxu0 %v365
        %1105 = vmatpush2.msra.mxu0 %v364
        %1106 = vmatprep.subr.mxu0 %v361
        %1107 = vmatpush2.msra.mxu0 %v360
        %1108 = vmatprep.mubr.f32.mxu0 %v1038
        %1109 = vmatmul.mubr.f32.gmra.mxu0 %v1036
        %v1110 = vpop.f32.mrf.mxu0
        %v1111 = vadd.f32 0.0, %v1110
        %v1112 = vpop.f32.mrf.mxu0
        %v1113 = vadd.f32 0.0, %v1112
        %1114 = vdwg.mxu0
        %1115 = vmatprep.subr.mxu0 %v485
        %1116 = vmatpush1.msra.mxu0 %v484
        %1117 = vmatprep.subr.mxu0 %v481
        %1118 = vmatpush1.msra.mxu0 %v480
        %1119 = vmatprep.subr.mxu0 %v477
        %1120 = vmatpush1.msra.mxu0 %v476
        %1121 = vmatprep.subr.mxu0 %v473
        %1122 = vmatpush1.msra.mxu0 %v472
        %1123 = vmatprep.subr.mxu0 %v469
        %1124 = vmatpush1.msra.mxu0 %v468
        %1125 = vmatprep.subr.mxu0 %v465
        %1126 = vmatpush1.msra.mxu0 %v464
        %1127 = vmatprep.subr.mxu0 %v461
        %1128 = vmatpush1.msra.mxu0 %v460
        %1129 = vmatprep.subr.mxu0 %v457
        %1130 = vmatpush1.msra.mxu0 %v456
        %1131 = vmatprep.subr.mxu0 %v453
        %1132 = vmatpush1.msra.mxu0 %v452
        %1133 = vmatprep.subr.mxu0 %v449
        %1134 = vmatpush1.msra.mxu0 %v448
        %1135 = vmatprep.subr.mxu0 %v445
        %1136 = vmatpush1.msra.mxu0 %v444
        %1137 = vmatprep.subr.mxu0 %v441
        %1138 = vmatpush1.msra.mxu0 %v440
        %1139 = vmatprep.subr.mxu0 %v437
        %1140 = vmatpush1.msra.mxu0 %v436
        %1141 = vmatprep.subr.mxu0 %v433
        %1142 = vmatpush1.msra.mxu0 %v432
        %1143 = vmatprep.subr.mxu0 %v429
        %1144 = vmatpush1.msra.mxu0 %v428
        %1145 = vmatprep.subr.mxu0 %v425
        %1146 = vmatpush1.msra.mxu0 %v424
        %1147 = vmatprep.subr.mxu0 %v549
        %1148 = vmatpush2.msra.mxu0 %v548
        %1149 = vmatprep.subr.mxu0 %v545
        %1150 = vmatpush2.msra.mxu0 %v544
        %1151 = vmatprep.subr.mxu0 %v541
        %1152 = vmatpush2.msra.mxu0 %v540
        %1153 = vmatprep.subr.mxu0 %v537
        %1154 = vmatpush2.msra.mxu0 %v536
        %1155 = vmatprep.subr.mxu0 %v533
        %1156 = vmatpush2.msra.mxu0 %v532
        %1157 = vmatprep.subr.mxu0 %v529
        %1158 = vmatpush2.msra.mxu0 %v528
        %1159 = vmatprep.subr.mxu0 %v525
        %1160 = vmatpush2.msra.mxu0 %v524
        %1161 = vmatprep.subr.mxu0 %v521
        %1162 = vmatpush2.msra.mxu0 %v520
        %1163 = vmatprep.subr.mxu0 %v517
        %1164 = vmatpush2.msra.mxu0 %v516
        %1165 = vmatprep.subr.mxu0 %v513
        %1166 = vmatpush2.msra.mxu0 %v512
        %1167 = vmatprep.subr.mxu0 %v509
        %1168 = vmatpush2.msra.mxu0 %v508
        %1169 = vmatprep.subr.mxu0 %v505
        %1170 = vmatpush2.msra.mxu0 %v504
        %1171 = vmatprep.subr.mxu0 %v501
        %1172 = vmatpush2.msra.mxu0 %v500
        %1173 = vmatprep.subr.mxu0 %v497
        %1174 = vmatpush2.msra.mxu0 %v496
        %1175 = vmatprep.subr.mxu0 %v493
        %1176 = vmatpush2.msra.mxu0 %v492
        %1177 = vmatprep.subr.mxu0 %v489
        %1178 = vmatpush2.msra.mxu0 %v488
        %1179 = vmatprep.mubr.f32.mxu0 %v1039
        %1180 = vmatmul.mubr.f32.gmra.mxu0 %v1037
        %v1181 = vpop.f32.mrf.mxu0
        %v1182 = vadd.f32 %v1111, %v1181
        %v1183 = vpop.f32.mrf.mxu0
        %v1184 = vadd.f32 %v1113, %v1183
        %1185 = vdwg.mxu0
        %1186 = vmatprep.subr.mxu0 %v359
        %1187 = vmatpush1.msra.mxu0 %v358
        %1188 = vmatprep.subr.mxu0 %v355
        %1189 = vmatpush1.msra.mxu0 %v354
        %1190 = vmatprep.subr.mxu0 %v351
        %1191 = vmatpush1.msra.mxu0 %v350
        %1192 = vmatprep.subr.mxu0 %v347
        %1193 = vmatpush1.msra.mxu0 %v346
        %1194 = vmatprep.subr.mxu0 %v343
        %1195 = vmatpush1.msra.mxu0 %v342
        %1196 = vmatprep.subr.mxu0 %v339
        %1197 = vmatpush1.msra.mxu0 %v338
        %1198 = vmatprep.subr.mxu0 %v335
        %1199 = vmatpush1.msra.mxu0 %v334
        %1200 = vmatprep.subr.mxu0 %v331
        %1201 = vmatpush1.msra.mxu0 %v330
        %1202 = vmatprep.subr.mxu0 %v327
        %1203 = vmatpush1.msra.mxu0 %v326
        %1204 = vmatprep.subr.mxu0 %v323
        %1205 = vmatpush1.msra.mxu0 %v322
        %1206 = vmatprep.subr.mxu0 %v319
        %1207 = vmatpush1.msra.mxu0 %v318
        %1208 = vmatprep.subr.mxu0 %v315
        %1209 = vmatpush1.msra.mxu0 %v314
        %1210 = vmatprep.subr.mxu0 %v311
        %1211 = vmatpush1.msra.mxu0 %v310
        %1212 = vmatprep.subr.mxu0 %v307
        %1213 = vmatpush1.msra.mxu0 %v306
        %1214 = vmatprep.subr.mxu0 %v303
        %1215 = vmatpush1.msra.mxu0 %v302
        %1216 = vmatprep.subr.mxu0 %v299
        %1217 = vmatpush1.msra.mxu0 %v298
        %1218 = vmatprep.subr.mxu0 %v423
        %1219 = vmatpush2.msra.mxu0 %v422
        %1220 = vmatprep.subr.mxu0 %v419
        %1221 = vmatpush2.msra.mxu0 %v418
        %1222 = vmatprep.subr.mxu0 %v415
        %1223 = vmatpush2.msra.mxu0 %v414
        %1224 = vmatprep.subr.mxu0 %v411
        %1225 = vmatpush2.msra.mxu0 %v410
        %1226 = vmatprep.subr.mxu0 %v407
        %1227 = vmatpush2.msra.mxu0 %v406
        %1228 = vmatprep.subr.mxu0 %v403
        %1229 = vmatpush2.msra.mxu0 %v402
        %1230 = vmatprep.subr.mxu0 %v399
        %1231 = vmatpush2.msra.mxu0 %v398
        %1232 = vmatprep.subr.mxu0 %v395
        %1233 = vmatpush2.msra.mxu0 %v394
        %1234 = vmatprep.subr.mxu0 %v391
        %1235 = vmatpush2.msra.mxu0 %v390
        %1236 = vmatprep.subr.mxu0 %v387
        %1237 = vmatpush2.msra.mxu0 %v386
        %1238 = vmatprep.subr.mxu0 %v383
        %1239 = vmatpush2.msra.mxu0 %v382
        %1240 = vmatprep.subr.mxu0 %v379
        %1241 = vmatpush2.msra.mxu0 %v378
        %1242 = vmatprep.subr.mxu0 %v375
        %1243 = vmatpush2.msra.mxu0 %v374
        %1244 = vmatprep.subr.mxu0 %v371
        %1245 = vmatpush2.msra.mxu0 %v370
        %1246 = vmatprep.subr.mxu0 %v367
        %1247 = vmatpush2.msra.mxu0 %v366
        %1248 = vmatprep.subr.mxu0 %v363
        %1249 = vmatpush2.msra.mxu0 %v362
        %1250 = vmatprep.mubr.f32.mxu0 %v1038
        %1251 = vmatmul.mubr.f32.gmra.mxu0 %v1036
        %v1252 = vpop.f32.mrf.mxu0
        %v1253 = vadd.f32 0.0, %v1252
        %v1254 = vpop.f32.mrf.mxu0
        %v1255 = vadd.f32 0.0, %v1254
        %1256 = vdwg.mxu0
        %1257 = vmatprep.subr.mxu0 %v487
        %1258 = vmatpush1.msra.mxu0 %v486
        %1259 = vmatprep.subr.mxu0 %v483
        %1260 = vmatpush1.msra.mxu0 %v482
        %1261 = vmatprep.subr.mxu0 %v479
        %1262 = vmatpush1.msra.mxu0 %v478
        %1263 = vmatprep.subr.mxu0 %v475
        %1264 = vmatpush1.msra.mxu0 %v474
        %1265 = vmatprep.subr.mxu0 %v471
        %1266 = vmatpush1.msra.mxu0 %v470
        %1267 = vmatprep.subr.mxu0 %v467
        %1268 = vmatpush1.msra.mxu0 %v466
        %1269 = vmatprep.subr.mxu0 %v463
        %1270 = vmatpush1.msra.mxu0 %v462
        %1271 = vmatprep.subr.mxu0 %v459
        %1272 = vmatpush1.msra.mxu0 %v458
        %1273 = vmatprep.subr.mxu0 %v455
        %1274 = vmatpush1.msra.mxu0 %v454
        %1275 = vmatprep.subr.mxu0 %v451
        %1276 = vmatpush1.msra.mxu0 %v450
        %1277 = vmatprep.subr.mxu0 %v447
        %1278 = vmatpush1.msra.mxu0 %v446
        %1279 = vmatprep.subr.mxu0 %v443
        %1280 = vmatpush1.msra.mxu0 %v442
        %1281 = vmatprep.subr.mxu0 %v439
        %1282 = vmatpush1.msra.mxu0 %v438
        %1283 = vmatprep.subr.mxu0 %v435
        %1284 = vmatpush1.msra.mxu0 %v434
        %1285 = vmatprep.subr.mxu0 %v431
        %1286 = vmatpush1.msra.mxu0 %v430
        %1287 = vmatprep.subr.mxu0 %v427
        %1288 = vmatpush1.msra.mxu0 %v426
        %1289 = vmatprep.subr.mxu0 %v551
        %1290 = vmatpush2.msra.mxu0 %v550
        %1291 = vmatprep.subr.mxu0 %v547
        %1292 = vmatpush2.msra.mxu0 %v546
        %1293 = vmatprep.subr.mxu0 %v543
        %1294 = vmatpush2.msra.mxu0 %v542
        %1295 = vmatprep.subr.mxu0 %v539
        %1296 = vmatpush2.msra.mxu0 %v538
        %1297 = vmatprep.subr.mxu0 %v535
        %1298 = vmatpush2.msra.mxu0 %v534
        %1299 = vmatprep.subr.mxu0 %v531
        %1300 = vmatpush2.msra.mxu0 %v530
        %1301 = vmatprep.subr.mxu0 %v527
        %1302 = vmatpush2.msra.mxu0 %v526
        %1303 = vmatprep.subr.mxu0 %v523
        %1304 = vmatpush2.msra.mxu0 %v522
        %1305 = vmatprep.subr.mxu0 %v519
        %1306 = vmatpush2.msra.mxu0 %v518
        %1307 = vmatprep.subr.mxu0 %v515
        %1308 = vmatpush2.msra.mxu0 %v514
        %1309 = vmatprep.subr.mxu0 %v511
        %1310 = vmatpush2.msra.mxu0 %v510
        %1311 = vmatprep.subr.mxu0 %v507
        %1312 = vmatpush2.msra.mxu0 %v506
        %1313 = vmatprep.subr.mxu0 %v503
        %1314 = vmatpush2.msra.mxu0 %v502
        %1315 = vmatprep.subr.mxu0 %v499
        %1316 = vmatpush2.msra.mxu0 %v498
        %1317 = vmatprep.subr.mxu0 %v495
        %1318 = vmatpush2.msra.mxu0 %v494
        %1319 = vmatprep.subr.mxu0 %v491
        %1320 = vmatpush2.msra.mxu0 %v490
        %1321 = vmatprep.mubr.f32.mxu0 %v1039
        %1322 = vmatmul.mubr.f32.gmra.mxu0 %v1037
        %v1323 = vpop.f32.mrf.mxu0
        %v1324 = vadd.f32 %v1253, %v1323
        %v1325 = vpop.f32.mrf.mxu0
        %v1326 = vadd.f32 %v1255, %v1325
        %1327 = vdwg.mxu0
        %v1328 = vadd.f32 %v960, %v1182
        %v1329 = vadd.f32 %v961, %v1184
        %v1330 = vadd.f32 %v962, %v1324
        %v1331 = vadd.f32 %v963, %v1326
        %1332 = vst [vmem:[%s959] sm:$0xff] %v1328
        %1333 = vst [vmem:[%s959 + $0x8] sm:$0xff] %v1329
        %1334 = vst [vmem:[%s959 + $0x10] sm:$0xff] %v1330
        %1335 = vst [vmem:[%s959 + $0x18] sm:$0xff] %v1331
        // Predicated region
        $region49: #{tpu_custom_call.1} parent=31 // pred_check
          %p1336 = pneg %p284
        $region50: #{tpu_custom_call.1} parent=31 // pred_check_branch
          %1338 = sbr.rel (%p1336) target = $region52
        $region51: #{tpu_custom_call.1} parent=31 // pred_region
          %v1339 = vld [vmem:[%s250] sm:$0xf]
          %v1340 = vld [vmem:[#allocation2] sm:$0xff]
          %v1341 = vld [vmem:[#allocation2 + $0x8] sm:$0xff]
          %v1342 = vld [vmem:[#allocation2 + $0x10] sm:$0xff]
          %v1343 = vld [vmem:[#allocation2 + $0x18] sm:$0xff]
          %v1345 = vlaneseq
          %v1346 = vshrl.u32 %v1345, 7
          %v1347 = vsub.s32 0, %v1346
          %v1348 = vrot.slane %v1339, %v1347
          %v1349 = vlaneseq
          %v1350 = vshrl.u32 %v1349, 7
          %v1351 = vsub.s32 1, %v1350
          %v1352 = vrot.slane %v1339, %v1351
          %v1353 = vlaneseq
          %v1354 = vshrl.u32 %v1353, 7
          %v1355 = vsub.s32 2, %v1354
          %v1356 = vrot.slane %v1339, %v1355
          %v1357 = vlaneseq
          %v1358 = vshrl.u32 %v1357, 7
          %v1359 = vsub.s32 3, %v1358
          %v1360 = vrot.slane %v1339, %v1359
          %v1365 = vadd.f32 %v1340, %v1348
          %v1366 = vadd.f32 %v1341, %v1352
          %v1367 = vadd.f32 %v1342, %v1356
          %v1368 = vadd.f32 %v1343, %v1360
          %1369 = vst [vmem:[%s277] sm:$0xff] %v1365
          %1370 = vst [vmem:[%s277 + $0x8] sm:$0xff] %v1366
          %1371 = vst [vmem:[%s277 + $0x10] sm:$0xff] %v1367
          %1372 = vst [vmem:[%s277 + $0x18] sm:$0xff] %v1368
          %v1373 = vld [vmem:[%s959] sm:$0xff]
          %v1374 = vld [vmem:[%s959 + $0x8] sm:$0xff]
          %v1375 = vld [vmem:[%s959 + $0x10] sm:$0xff]
          %v1376 = vld [vmem:[%s959 + $0x18] sm:$0xff]
          %v1377 = vadd.f32 %v1373, %v1348
          %v1378 = vadd.f32 %v1374, %v1352
          %v1379 = vadd.f32 %v1375, %v1356
          %v1380 = vadd.f32 %v1376, %v1360
          %s1381 = scalar_lea.vmem %s277, 32 [#allocation9]
          %1382 = vst [vmem:[%s1381] sm:$0xff] %v1377
          %1383 = vst [vmem:[%s1381 + $0x8] sm:$0xff] %v1378
          %1384 = vst [vmem:[%s1381 + $0x10] sm:$0xff] %v1379
          %1385 = vst [vmem:[%s1381 + $0x18] sm:$0xff] %v1380
        $region52: #{tpu_custom_call.1} parent=31 // pred_fallthru
          _
        %s1386 = sand.u32 %s132, 1
        %s1387 = scalar_lea.sflag [#allocation5], %s1386
        %s1388 = sand.u32 %s132, 1
        %s1389 = smul.addr %s1388, 64
        %s1390 = scalar_lea.vmem [#allocation9], %s1389
        // Predicated region
        $region53: #{tpu_custom_call.1} parent=31 // pred_check
          %p1391 = pneg %p142
        $region54: #{tpu_custom_call.1} parent=31 // pred_check_branch
          %1393 = sbr.rel (%p1391) target = $region56
        $region55: #{tpu_custom_call.1} parent=31 // pred_region
          %s1394 = smul.u32 4, %s27
          %s1396 = ssub.s32 1024, 1024
          %1397 = vsyncadd %s1387, %s1396
          %s1398 = smul.addr %s26, 8
          %s1399 = sadd.s32 %s1394, %s1398
          %s1400 = smul.addr %s1399, 128
          %s1401 = scalar_lea.hbm %s3, %s1400
          %s1402 = sshll.u32 %s1390, 4
          %s1403 = int_to_ptr.vmem [resolvable:$true] %s1402
          %1408 = dma.vmem_to_hbm [thread:$0]  %s1403, 1024, %s1401, %s1387, 512, 1024, 32
        $region56: #{tpu_custom_call.1} parent=31 // pred_fallthru
          _
      $region32: #{tpu_custom_call.1} parent=5 // pred_fallthru
        _
      %p1409 = scmp.le.s32.totalorder 2, %s16
      // Predicated region
      $region57: #{tpu_custom_call.1} parent=5 // pred_check
        %p1410 = pneg %p1409
      $region58: #{tpu_custom_call.1} parent=5 // pred_check_branch
        %1412 = sbr.rel (%p1410) target = $region60
      $region59: #{tpu_custom_call.1} parent=5 // pred_region
        %s1413 = ssub.s32 %s16, 2
        // Predicated region
        $region61: #{tpu_custom_call.1} parent=59 // pred_check
          %p1414 = pneg %p148
        $region62: #{tpu_custom_call.1} parent=59 // pred_check_branch
          %1416 = sbr.rel (%p1414) target = $region64
        $region63: #{tpu_custom_call.1} parent=59 // pred_region
          %s1417 = sand.u32 %s133, 1
          %s1418 = scalar_lea.sflag [#allocation5], %s1417
          %s1419 = sand.u32 %s133, 1
          %s1420 = smul.addr %s1419, 64
          %s1421 = scalar_lea.vmem [#allocation9], %s1420
          %1422 = dma.done %s1418, 1024
        $region64: #{tpu_custom_call.1} parent=59 // pred_fallthru
          _
      $region60: #{tpu_custom_call.1} parent=5 // pred_fallthru
        _
    $region6: #{tpu_custom_call.1} parent=1 // loop_footer
      %s20 = sadd.s32 1, %s16
    $region7: #{tpu_custom_call.1} parent=1 // loop_footer_branch
      %15 = sbr.rel target = $region3
    $region8: #{tpu_custom_call.1} parent=1 // loop_exit
      _
    %1423 = vsyncpa [#allocation4], 1
    %s1424 = scalar_lea.sflag [#allocation4], 1
    %1425 = vsyncpa %s1424, 1
    %1426 = vsyncpa [#allocation7], 1
    %s1427 = scalar_lea.sflag [#allocation7], 1
    %1428 = vsyncpa %s1427, 1
    %1429 = vsyncpa [#allocation5], 1
    %s1430 = scalar_lea.sflag [#allocation5], 1
    %1431 = vsyncpa %s1430, 1

</llo_original>
